<compile_context>
chip_gen: v7x
topology: tpu7x:2x2x1
jax: 0.10.0
libtpu: 0.0.40
codegen_flags: <defaults>
</compile_context>

<pallas_src>
import functools

import jax
import jax.numpy as jnp
from jax import lax
from jax.experimental import pallas as pl
from jax.experimental.pallas import tpu as pltpu


def _fused_encoder_kernel(
    xw1_ref,   # [T, tile_b, 4*H1]  precomputed x @ W_ih1^T + (b_ih1 + b_hh1)
    whh1_ref,  # [H1, 4*H1]         layer-1 recurrent weights (compute_dtype)
    wih2_ref,  # [H1, 4*H2]         layer-2 input weights     (compute_dtype)
    whh2_ref,  # [H2, 4*H2]         layer-2 recurrent weights (compute_dtype)
    b2_ref,    # [1, 4*H2]          fused layer-2 bias (b_ih2 + b_hh2), f32
    out_ref,   # [T, tile_b, H2]
    hn_ref,    # [tile_b, H2]
    cn_ref,    # [tile_b, H2]
    *,
    seq_len, batch, h1, h2, unroll, compute_dtype,
):
    """Fused 2-layer LSTM recurrence; gate order (i, f, g, o) as in PyTorch."""
    # Hoisted weight / bias loads (resident across the whole time loop).
    whh1 = whh1_ref[...]
    wih2 = wih2_ref[...]
    whh2 = whh2_ref[...]
    b2 = jnp.broadcast_to(b2_ref[...], (batch, 4 * h2))   # hoisted broadcast

    def cell(gates, c, hidden):
        i = jax.nn.sigmoid(gates[:, 0 * hidden:1 * hidden])
        f = jax.nn.sigmoid(gates[:, 1 * hidden:2 * hidden])
        g = jnp.tanh(gates[:, 2 * hidden:3 * hidden])
        o = jax.nn.sigmoid(gates[:, 3 * hidden:4 * hidden])
        c_new = f * c + i * g
        h_new = o * jnp.tanh(c_new)
        return h_new, c_new

    def step(t, carry):
        h1c, c1c, h2c, c2c = carry
        # Layer 1: input projection + bias already folded into xw1.
        g1 = xw1_ref[t] + jnp.dot(
            h1c.astype(compute_dtype), whh1, preferred_element_type=jnp.float32)
        h1n, c1n = cell(g1, c1c, h1)
        # Layer 2: input projection fused here (no HBM round-trip of out1).
        g2 = (jnp.dot(h1n.astype(compute_dtype), wih2,
                      preferred_element_type=jnp.float32)
              + b2
              + jnp.dot(h2c.astype(compute_dtype), whh2,
                        preferred_element_type=jnp.float32))
        h2n, c2n = cell(g2, c2c, h2)
        out_ref[t] = h2n                     # leading-(time)-axis store
        return h1n, c1n, h2n, c2n

    init = (jnp.zeros((batch, h1), jnp.float32),
            jnp.zeros((batch, h1), jnp.float32),
            jnp.zeros((batch, h2), jnp.float32),
            jnp.zeros((batch, h2), jnp.float32))
    _, _, h2f, c2f = lax.fori_loop(0, seq_len, step, init, unroll=unroll)
    hn_ref[...] = h2f
    cn_ref[...] = c2f


def _pick_batch_tile(batch, seq_len, h1, h2, itemsize=4):
    """Largest sublane-aligned batch tile whose double-buffered per-tile
    sequence buffers fit in a conservative VMEM budget (v7x has 64 MiB)."""
    if batch % 8 != 0:
        return batch                     # block == full batch dim (legal tiling)
    budget = 32 << 20
    per_row = 2 * seq_len * (4 * h1 + h2) * itemsize   # in + out, 2x buffered
    max_rows = max(8, budget // max(per_row, 1))
    for cand in (512, 256, 128, 64, 32, 16, 8):
        if batch % cand == 0 and cand <= max_rows:
            return cand
    return 8


def encoder_forward(x, params, *, compute_dtype=jnp.float32):
    """x: [B, T, feature_len] float32. Returns (output [B,T,emb], (h_n, c_n)).

    Set compute_dtype=jnp.bfloat16 on v6e/v7x for the bf16 MXU path (f32
    accumulation / gate math is kept)."""
    B, T, _ = x.shape
    wih1, whh1, b1, wih2, whh2, b2 = params
    H1 = whh1.shape[0]            # 2 * embedding_dim
    H2 = whh2.shape[0]            # embedding_dim

    # Hoisted, time-parallel input projection for layer 1: one GEMM (M = B*T),
    # fused bias folded in, output already time-major [T, B, 4*H1].
    xw1 = jnp.einsum(
        "btf,fg->tbg", x.astype(compute_dtype), wih1.astype(compute_dtype),
        preferred_element_type=jnp.float32) + b1

    tile_b = _pick_batch_tile(B, T, H1, H2)
    grid = (B // tile_b,)
    unroll = True if T <= 32 else 8

    kernel = functools.partial(
        _fused_encoder_kernel,
        seq_len=T, batch=tile_b, h1=H1, h2=H2,
        unroll=unroll, compute_dtype=compute_dtype,
    )

    out2, h_n, c_n = pl.pallas_call(
        kernel,
        grid=grid,
        in_specs=[
            pl.BlockSpec((T, tile_b, 4 * H1), lambda b: (0, b, 0)),
            pl.BlockSpec((H1, 4 * H1), lambda b: (0, 0)),   # weights: resident
            pl.BlockSpec((H1, 4 * H2), lambda b: (0, 0)),
            pl.BlockSpec((H2, 4 * H2), lambda b: (0, 0)),
            pl.BlockSpec((1, 4 * H2), lambda b: (0, 0)),
        ],
        out_specs=(
            pl.BlockSpec((T, tile_b, H2), lambda b: (0, b, 0)),
            pl.BlockSpec((tile_b, H2), lambda b: (b, 0)),
            pl.BlockSpec((tile_b, H2), lambda b: (b, 0)),
        ),
        out_shape=(
            jax.ShapeDtypeStruct((T, B, H2), jnp.float32),
            jax.ShapeDtypeStruct((B, H2), jnp.float32),
            jax.ShapeDtypeStruct((B, H2), jnp.float32),
        ),
        compiler_params=pltpu.CompilerParams(
            dimension_semantics=("parallel",),
            vmem_limit_bytes=48 << 20),
    )(xw1,
      whh1.astype(compute_dtype),
      wih2.astype(compute_dtype),
      whh2.astype(compute_dtype),
      b2.reshape(1, -1).astype(jnp.float32))

    output = jnp.transpose(out2, (1, 0, 2))               # [B, T, H2]
    return output, (h_n[None], c_n[None])                 # (1, B, H2) each


def encoder_reference(x, params):
    """Pure-JAX reference with the same math decomposition (for correctness)."""
    wih1, whh1, b1, wih2, whh2, b2 = params
    H1 = whh1.shape[0]
    H2 = whh2.shape[0]
    B, _, _ = x.shape
    xw1 = jnp.einsum("btf,fg->tbg", x, wih1) + b1          # [T, B, 4*H1]

    def cell(gates, c, hidden):
        i = jax.nn.sigmoid(gates[:, 0 * hidden:1 * hidden])
        f = jax.nn.sigmoid(gates[:, 1 * hidden:2 * hidden])
        g = jnp.tanh(gates[:, 2 * hidden:3 * hidden])
        o = jax.nn.sigmoid(gates[:, 3 * hidden:4 * hidden])
        c_new = f * c + i * g
        return o * jnp.tanh(c_new), c_new

    def step(carry, xw_t):
        h1, c1, h2, c2 = carry
        h1, c1 = cell(xw_t + h1 @ whh1, c1, H1)
        h2, c2 = cell(h1 @ wih2 + b2 + h2 @ whh2, c2, H2)
        return (h1, c1, h2, c2), h2

    init = (jnp.zeros((B, H1), jnp.float32), jnp.zeros((B, H1), jnp.float32),
            jnp.zeros((B, H2), jnp.float32), jnp.zeros((B, H2), jnp.float32))
    (_, _, h2f, c2f), ys = lax.scan(step, init, xw1)
    return jnp.transpose(ys, (1, 0, 2)), (h2f[None], c2f[None])


def init_encoder_params(key, feature_len, embedding_dim):
    """Deterministic init matching PyTorch LSTM parameter shapes.

    PyTorch stores W_ih as (4H, in), W_hh as (4H, H), biases (4H,).  We store
    them pre-transposed for row-major matmuls and fold the two biases into one.
    """
    H1 = 2 * embedding_dim
    H2 = embedding_dim

    def uni(k, shape, bound):
        return jax.random.uniform(k, shape, jnp.float32, -bound, bound)

    k = jax.random.split(key, 8)
    s1 = 1.0 / jnp.sqrt(H1)
    s2 = 1.0 / jnp.sqrt(H2)

    wih1 = uni(k[0], (feature_len, 4 * H1), s1)
    whh1 = uni(k[1], (H1, 4 * H1), s1)
    b1 = uni(k[2], (4 * H1,), s1) + uni(k[3], (4 * H1,), s1)
    wih2 = uni(k[4], (H1, 4 * H2), s2)
    whh2 = uni(k[5], (H2, 4 * H2), s2)
    b2 = uni(k[6], (4 * H2,), s2) + uni(k[7], (4 * H2,), s2)
    return (wih1, whh1, b1, wih2, whh2, b2)


if __name__ == "__main__":
    # Small shapes consistent with the module: batch=2, time=8, feature_len=8,
    # embedding_dim=16 (so rnn1 hidden = 32, rnn2 hidden = 16).
    B, T, FEAT, EMB = 2, 8, 8, 16

    key = jax.random.PRNGKey(0)
    k_x, k_p = jax.random.split(key)
    x = jax.random.normal(k_x, (B, T, FEAT), jnp.float32)
    params = init_encoder_params(k_p, FEAT, EMB)

    output, (h_n, c_n) = jax.jit(encoder_forward)(x, params)
    jax.block_until_ready((output, h_n, c_n))

    assert output.shape == (B, T, EMB)
    assert h_n.shape == (1, B, EMB) and c_n.shape == (1, B, EMB)
    assert jnp.all(jnp.isfinite(output))
    assert jnp.all(jnp.isfinite(h_n)) and jnp.all(jnp.isfinite(c_n))

    # Correctness vs. pure-JAX reference (same decomposition).
    ref_out, (ref_h, ref_c) = jax.jit(encoder_reference)(x, params)
    assert jnp.allclose(output, ref_out, atol=1e-2, rtol=1e-2)
    assert jnp.allclose(h_n, ref_h, atol=1e-2, rtol=1e-2)
    assert jnp.allclose(c_n, ref_c, atol=1e-2, rtol=1e-2)

    print("KERNEL_OK")
</pallas_src>

<mosaic_0001>
module attributes {stable_mosaic.version = 11 : i64} {
  func.func @_fused_encoder_kernel(%arg0: i32, %arg1: memref<8x2x128xf32, #tpu.memory_space<vmem>>, %arg2: memref<32x128xf32, #tpu.memory_space<vmem>>, %arg3: memref<32x64xf32, #tpu.memory_space<vmem>>, %arg4: memref<16x64xf32, #tpu.memory_space<vmem>>, %arg5: memref<1x64xf32, #tpu.memory_space<vmem>>, %arg6: memref<8x2x16xf32, #tpu.memory_space<vmem>>, %arg7: memref<2x16xf32, #tpu.memory_space<vmem>>, %arg8: memref<2x16xf32, #tpu.memory_space<vmem>>) attributes {dimension_semantics = [#tpu.dimension_semantics<parallel>], iteration_bounds = array<i64: 1>, scalar_prefetch = 0 : i64, scratch_operands = 0 : i64, tpu.core_type = #tpu.core_type<tc>, window_params = [{transform_indices = @transform_0, window_bounds = array<i64: 8, 2, 128>}, {pipeline_mode = #tpu.pipeline_mode<synchronous>, transform_indices = @transform_1, window_bounds = array<i64: 32, 128>}, {pipeline_mode = #tpu.pipeline_mode<synchronous>, transform_indices = @transform_2, window_bounds = array<i64: 32, 64>}, {pipeline_mode = #tpu.pipeline_mode<synchronous>, transform_indices = @transform_3, window_bounds = array<i64: 16, 64>}, {pipeline_mode = #tpu.pipeline_mode<synchronous>, transform_indices = @transform_4, window_bounds = array<i64: 1, 64>}, {transform_indices = @transform_5, window_bounds = array<i64: 8, 2, 16>}, {transform_indices = @transform_6, window_bounds = array<i64: 2, 16>}, {transform_indices = @transform_7, window_bounds = array<i64: 2, 16>}]} {
    %c0 = arith.constant 0 : index
    %c0_0 = arith.constant 0 : index
    %0 = vector.load %arg2[%c0, %c0_0] : memref<32x128xf32, #tpu.memory_space<vmem>>, vector<32x128xf32>
    %c0_1 = arith.constant 0 : index
    %c0_2 = arith.constant 0 : index
    %1 = vector.load %arg3[%c0_1, %c0_2] : memref<32x64xf32, #tpu.memory_space<vmem>>, vector<32x64xf32>
    %c0_3 = arith.constant 0 : index
    %c0_4 = arith.constant 0 : index
    %2 = vector.load %arg4[%c0_3, %c0_4] : memref<16x64xf32, #tpu.memory_space<vmem>>, vector<16x64xf32>
    %c0_5 = arith.constant 0 : index
    %c0_6 = arith.constant 0 : index
    %3 = vector.load %arg5[%c0_5, %c0_6] : memref<1x64xf32, #tpu.memory_space<vmem>>, vector<1x64xf32>
    %4 = vector.shape_cast %3 : vector<1x64xf32> to vector<1x64xf32>
    %5 = vector.broadcast %4 : vector<1x64xf32> to vector<2x64xf32>
    %cst = arith.constant 0.000000e+00 : f32
    %6 = vector.broadcast %cst : f32 to vector<2x32xf32>
    %cst_7 = arith.constant 0.000000e+00 : f32
    %7 = vector.broadcast %cst_7 : f32 to vector<2x32xf32>
    %cst_8 = arith.constant 0.000000e+00 : f32
    %8 = vector.broadcast %cst_8 : f32 to vector<2x16xf32>
    %cst_9 = arith.constant 0.000000e+00 : f32
    %9 = vector.broadcast %cst_9 : f32 to vector<2x16xf32>
    %c0_i32 = arith.constant 0 : i32
    %10 = arith.index_cast %c0_i32 : i32 to index
    %c0_10 = arith.constant 0 : index
    %c0_11 = arith.constant 0 : index
    %11 = vector.load %arg1[%10, %c0_10, %c0_11] : memref<8x2x128xf32, #tpu.memory_space<vmem>>, vector<1x2x128xf32>
    %12 = vector.shape_cast %11 : vector<1x2x128xf32> to vector<2x128xf32>
    %cst_12 = arith.constant dense<0.000000e+00> : vector<2x128xf32>
    %13 = tpu.matmul %6, %0, %cst_12 {dimension_numbers = #tpu.dot_dimension_numbers<[1], [0], [0], [1], [0, 0, 1, 1], [], []>} : vector<2x32xf32>, vector<32x128xf32>, vector<2x128xf32> -> vector<2x128xf32>
    %14 = arith.addf %12, %13 : vector<2x128xf32>
    %15 = vector.extract_strided_slice %14 {offsets = [0, 0], sizes = [2, 32], strides = [1, 1]} : vector<2x128xf32> to vector<2x32xf32>
    %16 = arith.negf %15 : vector<2x32xf32>
    %17 = math.exp %16 : vector<2x32xf32>
    %cst_13 = arith.constant 1.000000e+00 : f32
    %18 = vector.broadcast %cst_13 : f32 to vector<2x32xf32>
    %19 = arith.addf %18, %17 : vector<2x32xf32>
    %20 = arith.divf %18, %19 : vector<2x32xf32>
    %21 = vector.extract_strided_slice %14 {offsets = [0, 32], sizes = [2, 32], strides = [1, 1]} : vector<2x128xf32> to vector<2x32xf32>
    %22 = arith.negf %21 : vector<2x32xf32>
    %23 = math.exp %22 : vector<2x32xf32>
    %cst_14 = arith.constant 1.000000e+00 : f32
    %24 = vector.broadcast %cst_14 : f32 to vector<2x32xf32>
    %25 = arith.addf %24, %23 : vector<2x32xf32>
    %26 = arith.divf %24, %25 : vector<2x32xf32>
    %27 = vector.extract_strided_slice %14 {offsets = [0, 64], sizes = [2, 32], strides = [1, 1]} : vector<2x128xf32> to vector<2x32xf32>
    %28 = math.tanh %27 : vector<2x32xf32>
    %29 = vector.extract_strided_slice %14 {offsets = [0, 96], sizes = [2, 32], strides = [1, 1]} : vector<2x128xf32> to vector<2x32xf32>
    %30 = arith.negf %29 : vector<2x32xf32>
    %31 = math.exp %30 : vector<2x32xf32>
    %cst_15 = arith.constant 1.000000e+00 : f32
    %32 = vector.broadcast %cst_15 : f32 to vector<2x32xf32>
    %33 = arith.addf %32, %31 : vector<2x32xf32>
    %34 = arith.divf %32, %33 : vector<2x32xf32>
    %35 = arith.mulf %26, %7 : vector<2x32xf32>
    %36 = arith.mulf %20, %28 : vector<2x32xf32>
    %37 = arith.addf %35, %36 : vector<2x32xf32>
    %38 = math.tanh %37 : vector<2x32xf32>
    %39 = arith.mulf %34, %38 : vector<2x32xf32>
    %cst_16 = arith.constant dense<0.000000e+00> : vector<2x64xf32>
    %40 = tpu.matmul %39, %1, %cst_16 {dimension_numbers = #tpu.dot_dimension_numbers<[1], [0], [0], [1], [0, 0, 1, 1], [], []>} : vector<2x32xf32>, vector<32x64xf32>, vector<2x64xf32> -> vector<2x64xf32>
    %41 = arith.addf %40, %5 : vector<2x64xf32>
    %cst_17 = arith.constant dense<0.000000e+00> : vector<2x64xf32>
    %42 = tpu.matmul %8, %2, %cst_17 {dimension_numbers = #tpu.dot_dimension_numbers<[1], [0], [0], [1], [0, 0, 1, 1], [], []>} : vector<2x16xf32>, vector<16x64xf32>, vector<2x64xf32> -> vector<2x64xf32>
    %43 = arith.addf %41, %42 : vector<2x64xf32>
    %44 = vector.extract_strided_slice %43 {offsets = [0, 0], sizes = [2, 16], strides = [1, 1]} : vector<2x64xf32> to vector<2x16xf32>
    %45 = arith.negf %44 : vector<2x16xf32>
    %46 = math.exp %45 : vector<2x16xf32>
    %cst_18 = arith.constant 1.000000e+00 : f32
    %47 = vector.broadcast %cst_18 : f32 to vector<2x16xf32>
    %48 = arith.addf %47, %46 : vector<2x16xf32>
    %49 = arith.divf %47, %48 : vector<2x16xf32>
    %50 = vector.extract_strided_slice %43 {offsets = [0, 16], sizes = [2, 16], strides = [1, 1]} : vector<2x64xf32> to vector<2x16xf32>
    %51 = arith.negf %50 : vector<2x16xf32>
    %52 = math.exp %51 : vector<2x16xf32>
    %cst_19 = arith.constant 1.000000e+00 : f32
    %53 = vector.broadcast %cst_19 : f32 to vector<2x16xf32>
    %54 = arith.addf %53, %52 : vector<2x16xf32>
    %55 = arith.divf %53, %54 : vector<2x16xf32>
    %56 = vector.extract_strided_slice %43 {offsets = [0, 32], sizes = [2, 16], strides = [1, 1]} : vector<2x64xf32> to vector<2x16xf32>
    %57 = math.tanh %56 : vector<2x16xf32>
    %58 = vector.extract_strided_slice %43 {offsets = [0, 48], sizes = [2, 16], strides = [1, 1]} : vector<2x64xf32> to vector<2x16xf32>
    %59 = arith.negf %58 : vector<2x16xf32>
    %60 = math.exp %59 : vector<2x16xf32>
    %cst_20 = arith.constant 1.000000e+00 : f32
    %61 = vector.broadcast %cst_20 : f32 to vector<2x16xf32>
    %62 = arith.addf %61, %60 : vector<2x16xf32>
    %63 = arith.divf %61, %62 : vector<2x16xf32>
    %64 = arith.mulf %55, %9 : vector<2x16xf32>
    %65 = arith.mulf %49, %57 : vector<2x16xf32>
    %66 = arith.addf %64, %65 : vector<2x16xf32>
    %67 = math.tanh %66 : vector<2x16xf32>
    %68 = arith.mulf %63, %67 : vector<2x16xf32>
    %69 = arith.index_cast %c0_i32 : i32 to index
    %c0_21 = arith.constant 0 : index
    %c0_22 = arith.constant 0 : index
    %70 = vector.load %arg6[%69, %c0_21, %c0_22] : memref<8x2x16xf32, #tpu.memory_space<vmem>>, vector<1x2x16xf32>
    %71 = vector.shape_cast %70 : vector<1x2x16xf32> to vector<2x16xf32>
    %72 = vector.shape_cast %68 : vector<2x16xf32> to vector<1x2x16xf32>
    tpu.vector_store %arg6[%69, %c0_21, %c0_22], %72 {strides = array<i32>} : memref<8x2x16xf32, #tpu.memory_space<vmem>>, vector<1x2x16xf32>,
    %c1_i32 = arith.constant 1 : i32
    %73 = arith.index_cast %c1_i32 : i32 to index
    %c0_23 = arith.constant 0 : index
    %c0_24 = arith.constant 0 : index
    %74 = vector.load %arg1[%73, %c0_23, %c0_24] : memref<8x2x128xf32, #tpu.memory_space<vmem>>, vector<1x2x128xf32>
    %75 = vector.shape_cast %74 : vector<1x2x128xf32> to vector<2x128xf32>
    %cst_25 = arith.constant dense<0.000000e+00> : vector<2x128xf32>
    %76 = tpu.matmul %39, %0, %cst_25 {dimension_numbers = #tpu.dot_dimension_numbers<[1], [0], [0], [1], [0, 0, 1, 1], [], []>} : vector<2x32xf32>, vector<32x128xf32>, vector<2x128xf32> -> vector<2x128xf32>
    %77 = arith.addf %75, %76 : vector<2x128xf32>
    %78 = vector.extract_strided_slice %77 {offsets = [0, 0], sizes = [2, 32], strides = [1, 1]} : vector<2x128xf32> to vector<2x32xf32>
    %79 = arith.negf %78 : vector<2x32xf32>
    %80 = math.exp %79 : vector<2x32xf32>
    %cst_26 = arith.constant 1.000000e+00 : f32
    %81 = vector.broadcast %cst_26 : f32 to vector<2x32xf32>
    %82 = arith.addf %81, %80 : vector<2x32xf32>
    %83 = arith.divf %81, %82 : vector<2x32xf32>
    %84 = vector.extract_strided_slice %77 {offsets = [0, 32], sizes = [2, 32], strides = [1, 1]} : vector<2x128xf32> to vector<2x32xf32>
    %85 = arith.negf %84 : vector<2x32xf32>
    %86 = math.exp %85 : vector<2x32xf32>
    %cst_27 = arith.constant 1.000000e+00 : f32
    %87 = vector.broadcast %cst_27 : f32 to vector<2x32xf32>
    %88 = arith.addf %87, %86 : vector<2x32xf32>
    %89 = arith.divf %87, %88 : vector<2x32xf32>
    %90 = vector.extract_strided_slice %77 {offsets = [0, 64], sizes = [2, 32], strides = [1, 1]} : vector<2x128xf32> to vector<2x32xf32>
    %91 = math.tanh %90 : vector<2x32xf32>
    %92 = vector.extract_strided_slice %77 {offsets = [0, 96], sizes = [2, 32], strides = [1, 1]} : vector<2x128xf32> to vector<2x32xf32>
    %93 = arith.negf %92 : vector<2x32xf32>
    %94 = math.exp %93 : vector<2x32xf32>
    %cst_28 = arith.constant 1.000000e+00 : f32
    %95 = vector.broadcast %cst_28 : f32 to vector<2x32xf32>
    %96 = arith.addf %95, %94 : vector<2x32xf32>
    %97 = arith.divf %95, %96 : vector<2x32xf32>
    %98 = arith.mulf %89, %37 : vector<2x32xf32>
    %99 = arith.mulf %83, %91 : vector<2x32xf32>
    %100 = arith.addf %98, %99 : vector<2x32xf32>
    %101 = math.tanh %100 : vector<2x32xf32>
    %102 = arith.mulf %97, %101 : vector<2x32xf32>
    %cst_29 = arith.constant dense<0.000000e+00> : vector<2x64xf32>
    %103 = tpu.matmul %102, %1, %cst_29 {dimension_numbers = #tpu.dot_dimension_numbers<[1], [0], [0], [1], [0, 0, 1, 1], [], []>} : vector<2x32xf32>, vector<32x64xf32>, vector<2x64xf32> -> vector<2x64xf32>
    %104 = arith.addf %103, %5 : vector<2x64xf32>
    %cst_30 = arith.constant dense<0.000000e+00> : vector<2x64xf32>
    %105 = tpu.matmul %68, %2, %cst_30 {dimension_numbers = #tpu.dot_dimension_numbers<[1], [0], [0], [1], [0, 0, 1, 1], [], []>} : vector<2x16xf32>, vector<16x64xf32>, vector<2x64xf32> -> vector<2x64xf32>
    %106 = arith.addf %104, %105 : vector<2x64xf32>
    %107 = vector.extract_strided_slice %106 {offsets = [0, 0], sizes = [2, 16], strides = [1, 1]} : vector<2x64xf32> to vector<2x16xf32>
    %108 = arith.negf %107 : vector<2x16xf32>
    %109 = math.exp %108 : vector<2x16xf32>
    %cst_31 = arith.constant 1.000000e+00 : f32
    %110 = vector.broadcast %cst_31 : f32 to vector<2x16xf32>
    %111 = arith.addf %110, %109 : vector<2x16xf32>
    %112 = arith.divf %110, %111 : vector<2x16xf32>
    %113 = vector.extract_strided_slice %106 {offsets = [0, 16], sizes = [2, 16], strides = [1, 1]} : vector<2x64xf32> to vector<2x16xf32>
    %114 = arith.negf %113 : vector<2x16xf32>
    %115 = math.exp %114 : vector<2x16xf32>
    %cst_32 = arith.constant 1.000000e+00 : f32
    %116 = vector.broadcast %cst_32 : f32 to vector<2x16xf32>
    %117 = arith.addf %116, %115 : vector<2x16xf32>
    %118 = arith.divf %116, %117 : vector<2x16xf32>
    %119 = vector.extract_strided_slice %106 {offsets = [0, 32], sizes = [2, 16], strides = [1, 1]} : vector<2x64xf32> to vector<2x16xf32>
    %120 = math.tanh %119 : vector<2x16xf32>
    %121 = vector.extract_strided_slice %106 {offsets = [0, 48], sizes = [2, 16], strides = [1, 1]} : vector<2x64xf32> to vector<2x16xf32>
    %122 = arith.negf %121 : vector<2x16xf32>
    %123 = math.exp %122 : vector<2x16xf32>
    %cst_33 = arith.constant 1.000000e+00 : f32
    %124 = vector.broadcast %cst_33 : f32 to vector<2x16xf32>
    %125 = arith.addf %124, %123 : vector<2x16xf32>
    %126 = arith.divf %124, %125 : vector<2x16xf32>
    %127 = arith.mulf %118, %66 : vector<2x16xf32>
    %128 = arith.mulf %112, %120 : vector<2x16xf32>
    %129 = arith.addf %127, %128 : vector<2x16xf32>
    %130 = math.tanh %129 : vector<2x16xf32>
    %131 = arith.mulf %126, %130 : vector<2x16xf32>
    %132 = arith.index_cast %c1_i32 : i32 to index
    %c0_34 = arith.constant 0 : index
    %c0_35 = arith.constant 0 : index
    %133 = vector.load %arg6[%132, %c0_34, %c0_35] : memref<8x2x16xf32, #tpu.memory_space<vmem>>, vector<1x2x16xf32>
    %134 = vector.shape_cast %133 : vector<1x2x16xf32> to vector<2x16xf32>
    %135 = vector.shape_cast %131 : vector<2x16xf32> to vector<1x2x16xf32>
    tpu.vector_store %arg6[%132, %c0_34, %c0_35], %135 {strides = array<i32>} : memref<8x2x16xf32, #tpu.memory_space<vmem>>, vector<1x2x16xf32>,
    %c2_i32 = arith.constant 2 : i32
    %136 = arith.index_cast %c2_i32 : i32 to index
    %c0_36 = arith.constant 0 : index
    %c0_37 = arith.constant 0 : index
    %137 = vector.load %arg1[%136, %c0_36, %c0_37] : memref<8x2x128xf32, #tpu.memory_space<vmem>>, vector<1x2x128xf32>
    %138 = vector.shape_cast %137 : vector<1x2x128xf32> to vector<2x128xf32>
    %cst_38 = arith.constant dense<0.000000e+00> : vector<2x128xf32>
    %139 = tpu.matmul %102, %0, %cst_38 {dimension_numbers = #tpu.dot_dimension_numbers<[1], [0], [0], [1], [0, 0, 1, 1], [], []>} : vector<2x32xf32>, vector<32x128xf32>, vector<2x128xf32> -> vector<2x128xf32>
    %140 = arith.addf %138, %139 : vector<2x128xf32>
    %141 = vector.extract_strided_slice %140 {offsets = [0, 0], sizes = [2, 32], strides = [1, 1]} : vector<2x128xf32> to vector<2x32xf32>
    %142 = arith.negf %141 : vector<2x32xf32>
    %143 = math.exp %142 : vector<2x32xf32>
    %cst_39 = arith.constant 1.000000e+00 : f32
    %144 = vector.broadcast %cst_39 : f32 to vector<2x32xf32>
    %145 = arith.addf %144, %143 : vector<2x32xf32>
    %146 = arith.divf %144, %145 : vector<2x32xf32>
    %147 = vector.extract_strided_slice %140 {offsets = [0, 32], sizes = [2, 32], strides = [1, 1]} : vector<2x128xf32> to vector<2x32xf32>
    %148 = arith.negf %147 : vector<2x32xf32>
    %149 = math.exp %148 : vector<2x32xf32>
    %cst_40 = arith.constant 1.000000e+00 : f32
    %150 = vector.broadcast %cst_40 : f32 to vector<2x32xf32>
    %151 = arith.addf %150, %149 : vector<2x32xf32>
    %152 = arith.divf %150, %151 : vector<2x32xf32>
    %153 = vector.extract_strided_slice %140 {offsets = [0, 64], sizes = [2, 32], strides = [1, 1]} : vector<2x128xf32> to vector<2x32xf32>
    %154 = math.tanh %153 : vector<2x32xf32>
    %155 = vector.extract_strided_slice %140 {offsets = [0, 96], sizes = [2, 32], strides = [1, 1]} : vector<2x128xf32> to vector<2x32xf32>
    %156 = arith.negf %155 : vector<2x32xf32>
    %157 = math.exp %156 : vector<2x32xf32>
    %cst_41 = arith.constant 1.000000e+00 : f32
    %158 = vector.broadcast %cst_41 : f32 to vector<2x32xf32>
    %159 = arith.addf %158, %157 : vector<2x32xf32>
    %160 = arith.divf %158, %159 : vector<2x32xf32>
    %161 = arith.mulf %152, %100 : vector<2x32xf32>
    %162 = arith.mulf %146, %154 : vector<2x32xf32>
    %163 = arith.addf %161, %162 : vector<2x32xf32>
    %164 = math.tanh %163 : vector<2x32xf32>
    %165 = arith.mulf %160, %164 : vector<2x32xf32>
    %cst_42 = arith.constant dense<0.000000e+00> : vector<2x64xf32>
    %166 = tpu.matmul %165, %1, %cst_42 {dimension_numbers = #tpu.dot_dimension_numbers<[1], [0], [0], [1], [0, 0, 1, 1], [], []>} : vector<2x32xf32>, vector<32x64xf32>, vector<2x64xf32> -> vector<2x64xf32>
    %167 = arith.addf %166, %5 : vector<2x64xf32>
    %cst_43 = arith.constant dense<0.000000e+00> : vector<2x64xf32>
    %168 = tpu.matmul %131, %2, %cst_43 {dimension_numbers = #tpu.dot_dimension_numbers<[1], [0], [0], [1], [0, 0, 1, 1], [], []>} : vector<2x16xf32>, vector<16x64xf32>, vector<2x64xf32> -> vector<2x64xf32>
    %169 = arith.addf %167, %168 : vector<2x64xf32>
    %170 = vector.extract_strided_slice %169 {offsets = [0, 0], sizes = [2, 16], strides = [1, 1]} : vector<2x64xf32> to vector<2x16xf32>
    %171 = arith.negf %170 : vector<2x16xf32>
    %172 = math.exp %171 : vector<2x16xf32>
    %cst_44 = arith.constant 1.000000e+00 : f32
    %173 = vector.broadcast %cst_44 : f32 to vector<2x16xf32>
    %174 = arith.addf %173, %172 : vector<2x16xf32>
    %175 = arith.divf %173, %174 : vector<2x16xf32>
    %176 = vector.extract_strided_slice %169 {offsets = [0, 16], sizes = [2, 16], strides = [1, 1]} : vector<2x64xf32> to vector<2x16xf32>
    %177 = arith.negf %176 : vector<2x16xf32>
    %178 = math.exp %177 : vector<2x16xf32>
    %cst_45 = arith.constant 1.000000e+00 : f32
    %179 = vector.broadcast %cst_45 : f32 to vector<2x16xf32>
    %180 = arith.addf %179, %178 : vector<2x16xf32>
    %181 = arith.divf %179, %180 : vector<2x16xf32>
    %182 = vector.extract_strided_slice %169 {offsets = [0, 32], sizes = [2, 16], strides = [1, 1]} : vector<2x64xf32> to vector<2x16xf32>
    %183 = math.tanh %182 : vector<2x16xf32>
    %184 = vector.extract_strided_slice %169 {offsets = [0, 48], sizes = [2, 16], strides = [1, 1]} : vector<2x64xf32> to vector<2x16xf32>
    %185 = arith.negf %184 : vector<2x16xf32>
    %186 = math.exp %185 : vector<2x16xf32>
    %cst_46 = arith.constant 1.000000e+00 : f32
    %187 = vector.broadcast %cst_46 : f32 to vector<2x16xf32>
    %188 = arith.addf %187, %186 : vector<2x16xf32>
    %189 = arith.divf %187, %188 : vector<2x16xf32>
    %190 = arith.mulf %181, %129 : vector<2x16xf32>
    %191 = arith.mulf %175, %183 : vector<2x16xf32>
    %192 = arith.addf %190, %191 : vector<2x16xf32>
    %193 = math.tanh %192 : vector<2x16xf32>
    %194 = arith.mulf %189, %193 : vector<2x16xf32>
    %195 = arith.index_cast %c2_i32 : i32 to index
    %c0_47 = arith.constant 0 : index
    %c0_48 = arith.constant 0 : index
    %196 = vector.load %arg6[%195, %c0_47, %c0_48] : memref<8x2x16xf32, #tpu.memory_space<vmem>>, vector<1x2x16xf32>
    %197 = vector.shape_cast %196 : vector<1x2x16xf32> to vector<2x16xf32>
    %198 = vector.shape_cast %194 : vector<2x16xf32> to vector<1x2x16xf32>
    tpu.vector_store %arg6[%195, %c0_47, %c0_48], %198 {strides = array<i32>} : memref<8x2x16xf32, #tpu.memory_space<vmem>>, vector<1x2x16xf32>,
    %c3_i32 = arith.constant 3 : i32
    %199 = arith.index_cast %c3_i32 : i32 to index
    %c0_49 = arith.constant 0 : index
    %c0_50 = arith.constant 0 : index
    %200 = vector.load %arg1[%199, %c0_49, %c0_50] : memref<8x2x128xf32, #tpu.memory_space<vmem>>, vector<1x2x128xf32>
    %201 = vector.shape_cast %200 : vector<1x2x128xf32> to vector<2x128xf32>
    %cst_51 = arith.constant dense<0.000000e+00> : vector<2x128xf32>
    %202 = tpu.matmul %165, %0, %cst_51 {dimension_numbers = #tpu.dot_dimension_numbers<[1], [0], [0], [1], [0, 0, 1, 1], [], []>} : vector<2x32xf32>, vector<32x128xf32>, vector<2x128xf32> -> vector<2x128xf32>
    %203 = arith.addf %201, %202 : vector<2x128xf32>
    %204 = vector.extract_strided_slice %203 {offsets = [0, 0], sizes = [2, 32], strides = [1, 1]} : vector<2x128xf32> to vector<2x32xf32>
    %205 = arith.negf %204 : vector<2x32xf32>
    %206 = math.exp %205 : vector<2x32xf32>
    %cst_52 = arith.constant 1.000000e+00 : f32
    %207 = vector.broadcast %cst_52 : f32 to vector<2x32xf32>
    %208 = arith.addf %207, %206 : vector<2x32xf32>
    %209 = arith.divf %207, %208 : vector<2x32xf32>
    %210 = vector.extract_strided_slice %203 {offsets = [0, 32], sizes = [2, 32], strides = [1, 1]} : vector<2x128xf32> to vector<2x32xf32>
    %211 = arith.negf %210 : vector<2x32xf32>
    %212 = math.exp %211 : vector<2x32xf32>
    %cst_53 = arith.constant 1.000000e+00 : f32
    %213 = vector.broadcast %cst_53 : f32 to vector<2x32xf32>
    %214 = arith.addf %213, %212 : vector<2x32xf32>
    %215 = arith.divf %213, %214 : vector<2x32xf32>
    %216 = vector.extract_strided_slice %203 {offsets = [0, 64], sizes = [2, 32], strides = [1, 1]} : vector<2x128xf32> to vector<2x32xf32>
    %217 = math.tanh %216 : vector<2x32xf32>
    %218 = vector.extract_strided_slice %203 {offsets = [0, 96], sizes = [2, 32], strides = [1, 1]} : vector<2x128xf32> to vector<2x32xf32>
    %219 = arith.negf %218 : vector<2x32xf32>
    %220 = math.exp %219 : vector<2x32xf32>
    %cst_54 = arith.constant 1.000000e+00 : f32
    %221 = vector.broadcast %cst_54 : f32 to vector<2x32xf32>
    %222 = arith.addf %221, %220 : vector<2x32xf32>
    %223 = arith.divf %221, %222 : vector<2x32xf32>
    %224 = arith.mulf %215, %163 : vector<2x32xf32>
    %225 = arith.mulf %209, %217 : vector<2x32xf32>
    %226 = arith.addf %224, %225 : vector<2x32xf32>
    %227 = math.tanh %226 : vector<2x32xf32>
    %228 = arith.mulf %223, %227 : vector<2x32xf32>
    %cst_55 = arith.constant dense<0.000000e+00> : vector<2x64xf32>
    %229 = tpu.matmul %228, %1, %cst_55 {dimension_numbers = #tpu.dot_dimension_numbers<[1], [0], [0], [1], [0, 0, 1, 1], [], []>} : vector<2x32xf32>, vector<32x64xf32>, vector<2x64xf32> -> vector<2x64xf32>
    %230 = arith.addf %229, %5 : vector<2x64xf32>
    %cst_56 = arith.constant dense<0.000000e+00> : vector<2x64xf32>
    %231 = tpu.matmul %194, %2, %cst_56 {dimension_numbers = #tpu.dot_dimension_numbers<[1], [0], [0], [1], [0, 0, 1, 1], [], []>} : vector<2x16xf32>, vector<16x64xf32>, vector<2x64xf32> -> vector<2x64xf32>
    %232 = arith.addf %230, %231 : vector<2x64xf32>
    %233 = vector.extract_strided_slice %232 {offsets = [0, 0], sizes = [2, 16], strides = [1, 1]} : vector<2x64xf32> to vector<2x16xf32>
    %234 = arith.negf %233 : vector<2x16xf32>
    %235 = math.exp %234 : vector<2x16xf32>
    %cst_57 = arith.constant 1.000000e+00 : f32
    %236 = vector.broadcast %cst_57 : f32 to vector<2x16xf32>
    %237 = arith.addf %236, %235 : vector<2x16xf32>
    %238 = arith.divf %236, %237 : vector<2x16xf32>
    %239 = vector.extract_strided_slice %232 {offsets = [0, 16], sizes = [2, 16], strides = [1, 1]} : vector<2x64xf32> to vector<2x16xf32>
    %240 = arith.negf %239 : vector<2x16xf32>
    %241 = math.exp %240 : vector<2x16xf32>
    %cst_58 = arith.constant 1.000000e+00 : f32
    %242 = vector.broadcast %cst_58 : f32 to vector<2x16xf32>
    %243 = arith.addf %242, %241 : vector<2x16xf32>
    %244 = arith.divf %242, %243 : vector<2x16xf32>
    %245 = vector.extract_strided_slice %232 {offsets = [0, 32], sizes = [2, 16], strides = [1, 1]} : vector<2x64xf32> to vector<2x16xf32>
    %246 = math.tanh %245 : vector<2x16xf32>
    %247 = vector.extract_strided_slice %232 {offsets = [0, 48], sizes = [2, 16], strides = [1, 1]} : vector<2x64xf32> to vector<2x16xf32>
    %248 = arith.negf %247 : vector<2x16xf32>
    %249 = math.exp %248 : vector<2x16xf32>
    %cst_59 = arith.constant 1.000000e+00 : f32
    %250 = vector.broadcast %cst_59 : f32 to vector<2x16xf32>
    %251 = arith.addf %250, %249 : vector<2x16xf32>
    %252 = arith.divf %250, %251 : vector<2x16xf32>
    %253 = arith.mulf %244, %192 : vector<2x16xf32>
    %254 = arith.mulf %238, %246 : vector<2x16xf32>
    %255 = arith.addf %253, %254 : vector<2x16xf32>
    %256 = math.tanh %255 : vector<2x16xf32>
    %257 = arith.mulf %252, %256 : vector<2x16xf32>
    %258 = arith.index_cast %c3_i32 : i32 to index
    %c0_60 = arith.constant 0 : index
    %c0_61 = arith.constant 0 : index
    %259 = vector.load %arg6[%258, %c0_60, %c0_61] : memref<8x2x16xf32, #tpu.memory_space<vmem>>, vector<1x2x16xf32>
    %260 = vector.shape_cast %259 : vector<1x2x16xf32> to vector<2x16xf32>
    %261 = vector.shape_cast %257 : vector<2x16xf32> to vector<1x2x16xf32>
    tpu.vector_store %arg6[%258, %c0_60, %c0_61], %261 {strides = array<i32>} : memref<8x2x16xf32, #tpu.memory_space<vmem>>, vector<1x2x16xf32>,
    %c4_i32 = arith.constant 4 : i32
    %262 = arith.index_cast %c4_i32 : i32 to index
    %c0_62 = arith.constant 0 : index
    %c0_63 = arith.constant 0 : index
    %263 = vector.load %arg1[%262, %c0_62, %c0_63] : memref<8x2x128xf32, #tpu.memory_space<vmem>>, vector<1x2x128xf32>
    %264 = vector.shape_cast %263 : vector<1x2x128xf32> to vector<2x128xf32>
    %cst_64 = arith.constant dense<0.000000e+00> : vector<2x128xf32>
    %265 = tpu.matmul %228, %0, %cst_64 {dimension_numbers = #tpu.dot_dimension_numbers<[1], [0], [0], [1], [0, 0, 1, 1], [], []>} : vector<2x32xf32>, vector<32x128xf32>, vector<2x128xf32> -> vector<2x128xf32>
    %266 = arith.addf %264, %265 : vector<2x128xf32>
    %267 = vector.extract_strided_slice %266 {offsets = [0, 0], sizes = [2, 32], strides = [1, 1]} : vector<2x128xf32> to vector<2x32xf32>
    %268 = arith.negf %267 : vector<2x32xf32>
    %269 = math.exp %268 : vector<2x32xf32>
    %cst_65 = arith.constant 1.000000e+00 : f32
    %270 = vector.broadcast %cst_65 : f32 to vector<2x32xf32>
    %271 = arith.addf %270, %269 : vector<2x32xf32>
    %272 = arith.divf %270, %271 : vector<2x32xf32>
    %273 = vector.extract_strided_slice %266 {offsets = [0, 32], sizes = [2, 32], strides = [1, 1]} : vector<2x128xf32> to vector<2x32xf32>
    %274 = arith.negf %273 : vector<2x32xf32>
    %275 = math.exp %274 : vector<2x32xf32>
    %cst_66 = arith.constant 1.000000e+00 : f32
    %276 = vector.broadcast %cst_66 : f32 to vector<2x32xf32>
    %277 = arith.addf %276, %275 : vector<2x32xf32>
    %278 = arith.divf %276, %277 : vector<2x32xf32>
    %279 = vector.extract_strided_slice %266 {offsets = [0, 64], sizes = [2, 32], strides = [1, 1]} : vector<2x128xf32> to vector<2x32xf32>
    %280 = math.tanh %279 : vector<2x32xf32>
    %281 = vector.extract_strided_slice %266 {offsets = [0, 96], sizes = [2, 32], strides = [1, 1]} : vector<2x128xf32> to vector<2x32xf32>
    %282 = arith.negf %281 : vector<2x32xf32>
    %283 = math.exp %282 : vector<2x32xf32>
    %cst_67 = arith.constant 1.000000e+00 : f32
    %284 = vector.broadcast %cst_67 : f32 to vector<2x32xf32>
    %285 = arith.addf %284, %283 : vector<2x32xf32>
    %286 = arith.divf %284, %285 : vector<2x32xf32>
    %287 = arith.mulf %278, %226 : vector<2x32xf32>
    %288 = arith.mulf %272, %280 : vector<2x32xf32>
    %289 = arith.addf %287, %288 : vector<2x32xf32>
    %290 = math.tanh %289 : vector<2x32xf32>
    %291 = arith.mulf %286, %290 : vector<2x32xf32>
    %cst_68 = arith.constant dense<0.000000e+00> : vector<2x64xf32>
    %292 = tpu.matmul %291, %1, %cst_68 {dimension_numbers = #tpu.dot_dimension_numbers<[1], [0], [0], [1], [0, 0, 1, 1], [], []>} : vector<2x32xf32>, vector<32x64xf32>, vector<2x64xf32> -> vector<2x64xf32>
    %293 = arith.addf %292, %5 : vector<2x64xf32>
    %cst_69 = arith.constant dense<0.000000e+00> : vector<2x64xf32>
    %294 = tpu.matmul %257, %2, %cst_69 {dimension_numbers = #tpu.dot_dimension_numbers<[1], [0], [0], [1], [0, 0, 1, 1], [], []>} : vector<2x16xf32>, vector<16x64xf32>, vector<2x64xf32> -> vector<2x64xf32>
    %295 = arith.addf %293, %294 : vector<2x64xf32>
    %296 = vector.extract_strided_slice %295 {offsets = [0, 0], sizes = [2, 16], strides = [1, 1]} : vector<2x64xf32> to vector<2x16xf32>
    %297 = arith.negf %296 : vector<2x16xf32>
    %298 = math.exp %297 : vector<2x16xf32>
    %cst_70 = arith.constant 1.000000e+00 : f32
    %299 = vector.broadcast %cst_70 : f32 to vector<2x16xf32>
    %300 = arith.addf %299, %298 : vector<2x16xf32>
    %301 = arith.divf %299, %300 : vector<2x16xf32>
    %302 = vector.extract_strided_slice %295 {offsets = [0, 16], sizes = [2, 16], strides = [1, 1]} : vector<2x64xf32> to vector<2x16xf32>
    %303 = arith.negf %302 : vector<2x16xf32>
    %304 = math.exp %303 : vector<2x16xf32>
    %cst_71 = arith.constant 1.000000e+00 : f32
    %305 = vector.broadcast %cst_71 : f32 to vector<2x16xf32>
    %306 = arith.addf %305, %304 : vector<2x16xf32>
    %307 = arith.divf %305, %306 : vector<2x16xf32>
    %308 = vector.extract_strided_slice %295 {offsets = [0, 32], sizes = [2, 16], strides = [1, 1]} : vector<2x64xf32> to vector<2x16xf32>
    %309 = math.tanh %308 : vector<2x16xf32>
    %310 = vector.extract_strided_slice %295 {offsets = [0, 48], sizes = [2, 16], strides = [1, 1]} : vector<2x64xf32> to vector<2x16xf32>
    %311 = arith.negf %310 : vector<2x16xf32>
    %312 = math.exp %311 : vector<2x16xf32>
    %cst_72 = arith.constant 1.000000e+00 : f32
    %313 = vector.broadcast %cst_72 : f32 to vector<2x16xf32>
    %314 = arith.addf %313, %312 : vector<2x16xf32>
    %315 = arith.divf %313, %314 : vector<2x16xf32>
    %316 = arith.mulf %307, %255 : vector<2x16xf32>
    %317 = arith.mulf %301, %309 : vector<2x16xf32>
    %318 = arith.addf %316, %317 : vector<2x16xf32>
    %319 = math.tanh %318 : vector<2x16xf32>
    %320 = arith.mulf %315, %319 : vector<2x16xf32>
    %321 = arith.index_cast %c4_i32 : i32 to index
    %c0_73 = arith.constant 0 : index
    %c0_74 = arith.constant 0 : index
    %322 = vector.load %arg6[%321, %c0_73, %c0_74] : memref<8x2x16xf32, #tpu.memory_space<vmem>>, vector<1x2x16xf32>
    %323 = vector.shape_cast %322 : vector<1x2x16xf32> to vector<2x16xf32>
    %324 = vector.shape_cast %320 : vector<2x16xf32> to vector<1x2x16xf32>
    tpu.vector_store %arg6[%321, %c0_73, %c0_74], %324 {strides = array<i32>} : memref<8x2x16xf32, #tpu.memory_space<vmem>>, vector<1x2x16xf32>,
    %c5_i32 = arith.constant 5 : i32
    %325 = arith.index_cast %c5_i32 : i32 to index
    %c0_75 = arith.constant 0 : index
    %c0_76 = arith.constant 0 : index
    %326 = vector.load %arg1[%325, %c0_75, %c0_76] : memref<8x2x128xf32, #tpu.memory_space<vmem>>, vector<1x2x128xf32>
    %327 = vector.shape_cast %326 : vector<1x2x128xf32> to vector<2x128xf32>
    %cst_77 = arith.constant dense<0.000000e+00> : vector<2x128xf32>
    %328 = tpu.matmul %291, %0, %cst_77 {dimension_numbers = #tpu.dot_dimension_numbers<[1], [0], [0], [1], [0, 0, 1, 1], [], []>} : vector<2x32xf32>, vector<32x128xf32>, vector<2x128xf32> -> vector<2x128xf32>
    %329 = arith.addf %327, %328 : vector<2x128xf32>
    %330 = vector.extract_strided_slice %329 {offsets = [0, 0], sizes = [2, 32], strides = [1, 1]} : vector<2x128xf32> to vector<2x32xf32>
    %331 = arith.negf %330 : vector<2x32xf32>
    %332 = math.exp %331 : vector<2x32xf32>
    %cst_78 = arith.constant 1.000000e+00 : f32
    %333 = vector.broadcast %cst_78 : f32 to vector<2x32xf32>
    %334 = arith.addf %333, %332 : vector<2x32xf32>
    %335 = arith.divf %333, %334 : vector<2x32xf32>
    %336 = vector.extract_strided_slice %329 {offsets = [0, 32], sizes = [2, 32], strides = [1, 1]} : vector<2x128xf32> to vector<2x32xf32>
    %337 = arith.negf %336 : vector<2x32xf32>
    %338 = math.exp %337 : vector<2x32xf32>
    %cst_79 = arith.constant 1.000000e+00 : f32
    %339 = vector.broadcast %cst_79 : f32 to vector<2x32xf32>
    %340 = arith.addf %339, %338 : vector<2x32xf32>
    %341 = arith.divf %339, %340 : vector<2x32xf32>
    %342 = vector.extract_strided_slice %329 {offsets = [0, 64], sizes = [2, 32], strides = [1, 1]} : vector<2x128xf32> to vector<2x32xf32>
    %343 = math.tanh %342 : vector<2x32xf32>
    %344 = vector.extract_strided_slice %329 {offsets = [0, 96], sizes = [2, 32], strides = [1, 1]} : vector<2x128xf32> to vector<2x32xf32>
    %345 = arith.negf %344 : vector<2x32xf32>
    %346 = math.exp %345 : vector<2x32xf32>
    %cst_80 = arith.constant 1.000000e+00 : f32
    %347 = vector.broadcast %cst_80 : f32 to vector<2x32xf32>
    %348 = arith.addf %347, %346 : vector<2x32xf32>
    %349 = arith.divf %347, %348 : vector<2x32xf32>
    %350 = arith.mulf %341, %289 : vector<2x32xf32>
    %351 = arith.mulf %335, %343 : vector<2x32xf32>
    %352 = arith.addf %350, %351 : vector<2x32xf32>
    %353 = math.tanh %352 : vector<2x32xf32>
    %354 = arith.mulf %349, %353 : vector<2x32xf32>
    %cst_81 = arith.constant dense<0.000000e+00> : vector<2x64xf32>
    %355 = tpu.matmul %354, %1, %cst_81 {dimension_numbers = #tpu.dot_dimension_numbers<[1], [0], [0], [1], [0, 0, 1, 1], [], []>} : vector<2x32xf32>, vector<32x64xf32>, vector<2x64xf32> -> vector<2x64xf32>
    %356 = arith.addf %355, %5 : vector<2x64xf32>
    %cst_82 = arith.constant dense<0.000000e+00> : vector<2x64xf32>
    %357 = tpu.matmul %320, %2, %cst_82 {dimension_numbers = #tpu.dot_dimension_numbers<[1], [0], [0], [1], [0, 0, 1, 1], [], []>} : vector<2x16xf32>, vector<16x64xf32>, vector<2x64xf32> -> vector<2x64xf32>
    %358 = arith.addf %356, %357 : vector<2x64xf32>
    %359 = vector.extract_strided_slice %358 {offsets = [0, 0], sizes = [2, 16], strides = [1, 1]} : vector<2x64xf32> to vector<2x16xf32>
    %360 = arith.negf %359 : vector<2x16xf32>
    %361 = math.exp %360 : vector<2x16xf32>
    %cst_83 = arith.constant 1.000000e+00 : f32
    %362 = vector.broadcast %cst_83 : f32 to vector<2x16xf32>
    %363 = arith.addf %362, %361 : vector<2x16xf32>
    %364 = arith.divf %362, %363 : vector<2x16xf32>
    %365 = vector.extract_strided_slice %358 {offsets = [0, 16], sizes = [2, 16], strides = [1, 1]} : vector<2x64xf32> to vector<2x16xf32>
    %366 = arith.negf %365 : vector<2x16xf32>
    %367 = math.exp %366 : vector<2x16xf32>
    %cst_84 = arith.constant 1.000000e+00 : f32
    %368 = vector.broadcast %cst_84 : f32 to vector<2x16xf32>
    %369 = arith.addf %368, %367 : vector<2x16xf32>
    %370 = arith.divf %368, %369 : vector<2x16xf32>
    %371 = vector.extract_strided_slice %358 {offsets = [0, 32], sizes = [2, 16], strides = [1, 1]} : vector<2x64xf32> to vector<2x16xf32>
    %372 = math.tanh %371 : vector<2x16xf32>
    %373 = vector.extract_strided_slice %358 {offsets = [0, 48], sizes = [2, 16], strides = [1, 1]} : vector<2x64xf32> to vector<2x16xf32>
    %374 = arith.negf %373 : vector<2x16xf32>
    %375 = math.exp %374 : vector<2x16xf32>
    %cst_85 = arith.constant 1.000000e+00 : f32
    %376 = vector.broadcast %cst_85 : f32 to vector<2x16xf32>
    %377 = arith.addf %376, %375 : vector<2x16xf32>
    %378 = arith.divf %376, %377 : vector<2x16xf32>
    %379 = arith.mulf %370, %318 : vector<2x16xf32>
    %380 = arith.mulf %364, %372 : vector<2x16xf32>
    %381 = arith.addf %379, %380 : vector<2x16xf32>
    %382 = math.tanh %381 : vector<2x16xf32>
    %383 = arith.mulf %378, %382 : vector<2x16xf32>
    %384 = arith.index_cast %c5_i32 : i32 to index
    %c0_86 = arith.constant 0 : index
    %c0_87 = arith.constant 0 : index
    %385 = vector.load %arg6[%384, %c0_86, %c0_87] : memref<8x2x16xf32, #tpu.memory_space<vmem>>, vector<1x2x16xf32>
    %386 = vector.shape_cast %385 : vector<1x2x16xf32> to vector<2x16xf32>
    %387 = vector.shape_cast %383 : vector<2x16xf32> to vector<1x2x16xf32>
    tpu.vector_store %arg6[%384, %c0_86, %c0_87], %387 {strides = array<i32>} : memref<8x2x16xf32, #tpu.memory_space<vmem>>, vector<1x2x16xf32>,
    %c6_i32 = arith.constant 6 : i32
    %388 = arith.index_cast %c6_i32 : i32 to index
    %c0_88 = arith.constant 0 : index
    %c0_89 = arith.constant 0 : index
    %389 = vector.load %arg1[%388, %c0_88, %c0_89] : memref<8x2x128xf32, #tpu.memory_space<vmem>>, vector<1x2x128xf32>
    %390 = vector.shape_cast %389 : vector<1x2x128xf32> to vector<2x128xf32>
    %cst_90 = arith.constant dense<0.000000e+00> : vector<2x128xf32>
    %391 = tpu.matmul %354, %0, %cst_90 {dimension_numbers = #tpu.dot_dimension_numbers<[1], [0], [0], [1], [0, 0, 1, 1], [], []>} : vector<2x32xf32>, vector<32x128xf32>, vector<2x128xf32> -> vector<2x128xf32>
    %392 = arith.addf %390, %391 : vector<2x128xf32>
    %393 = vector.extract_strided_slice %392 {offsets = [0, 0], sizes = [2, 32], strides = [1, 1]} : vector<2x128xf32> to vector<2x32xf32>
    %394 = arith.negf %393 : vector<2x32xf32>
    %395 = math.exp %394 : vector<2x32xf32>
    %cst_91 = arith.constant 1.000000e+00 : f32
    %396 = vector.broadcast %cst_91 : f32 to vector<2x32xf32>
    %397 = arith.addf %396, %395 : vector<2x32xf32>
    %398 = arith.divf %396, %397 : vector<2x32xf32>
    %399 = vector.extract_strided_slice %392 {offsets = [0, 32], sizes = [2, 32], strides = [1, 1]} : vector<2x128xf32> to vector<2x32xf32>
    %400 = arith.negf %399 : vector<2x32xf32>
    %401 = math.exp %400 : vector<2x32xf32>
    %cst_92 = arith.constant 1.000000e+00 : f32
    %402 = vector.broadcast %cst_92 : f32 to vector<2x32xf32>
    %403 = arith.addf %402, %401 : vector<2x32xf32>
    %404 = arith.divf %402, %403 : vector<2x32xf32>
    %405 = vector.extract_strided_slice %392 {offsets = [0, 64], sizes = [2, 32], strides = [1, 1]} : vector<2x128xf32> to vector<2x32xf32>
    %406 = math.tanh %405 : vector<2x32xf32>
    %407 = vector.extract_strided_slice %392 {offsets = [0, 96], sizes = [2, 32], strides = [1, 1]} : vector<2x128xf32> to vector<2x32xf32>
    %408 = arith.negf %407 : vector<2x32xf32>
    %409 = math.exp %408 : vector<2x32xf32>
    %cst_93 = arith.constant 1.000000e+00 : f32
    %410 = vector.broadcast %cst_93 : f32 to vector<2x32xf32>
    %411 = arith.addf %410, %409 : vector<2x32xf32>
    %412 = arith.divf %410, %411 : vector<2x32xf32>
    %413 = arith.mulf %404, %352 : vector<2x32xf32>
    %414 = arith.mulf %398, %406 : vector<2x32xf32>
    %415 = arith.addf %413, %414 : vector<2x32xf32>
    %416 = math.tanh %415 : vector<2x32xf32>
    %417 = arith.mulf %412, %416 : vector<2x32xf32>
    %cst_94 = arith.constant dense<0.000000e+00> : vector<2x64xf32>
    %418 = tpu.matmul %417, %1, %cst_94 {dimension_numbers = #tpu.dot_dimension_numbers<[1], [0], [0], [1], [0, 0, 1, 1], [], []>} : vector<2x32xf32>, vector<32x64xf32>, vector<2x64xf32> -> vector<2x64xf32>
    %419 = arith.addf %418, %5 : vector<2x64xf32>
    %cst_95 = arith.constant dense<0.000000e+00> : vector<2x64xf32>
    %420 = tpu.matmul %383, %2, %cst_95 {dimension_numbers = #tpu.dot_dimension_numbers<[1], [0], [0], [1], [0, 0, 1, 1], [], []>} : vector<2x16xf32>, vector<16x64xf32>, vector<2x64xf32> -> vector<2x64xf32>
    %421 = arith.addf %419, %420 : vector<2x64xf32>
    %422 = vector.extract_strided_slice %421 {offsets = [0, 0], sizes = [2, 16], strides = [1, 1]} : vector<2x64xf32> to vector<2x16xf32>
    %423 = arith.negf %422 : vector<2x16xf32>
    %424 = math.exp %423 : vector<2x16xf32>
    %cst_96 = arith.constant 1.000000e+00 : f32
    %425 = vector.broadcast %cst_96 : f32 to vector<2x16xf32>
    %426 = arith.addf %425, %424 : vector<2x16xf32>
    %427 = arith.divf %425, %426 : vector<2x16xf32>
    %428 = vector.extract_strided_slice %421 {offsets = [0, 16], sizes = [2, 16], strides = [1, 1]} : vector<2x64xf32> to vector<2x16xf32>
    %429 = arith.negf %428 : vector<2x16xf32>
    %430 = math.exp %429 : vector<2x16xf32>
    %cst_97 = arith.constant 1.000000e+00 : f32
    %431 = vector.broadcast %cst_97 : f32 to vector<2x16xf32>
    %432 = arith.addf %431, %430 : vector<2x16xf32>
    %433 = arith.divf %431, %432 : vector<2x16xf32>
    %434 = vector.extract_strided_slice %421 {offsets = [0, 32], sizes = [2, 16], strides = [1, 1]} : vector<2x64xf32> to vector<2x16xf32>
    %435 = math.tanh %434 : vector<2x16xf32>
    %436 = vector.extract_strided_slice %421 {offsets = [0, 48], sizes = [2, 16], strides = [1, 1]} : vector<2x64xf32> to vector<2x16xf32>
    %437 = arith.negf %436 : vector<2x16xf32>
    %438 = math.exp %437 : vector<2x16xf32>
    %cst_98 = arith.constant 1.000000e+00 : f32
    %439 = vector.broadcast %cst_98 : f32 to vector<2x16xf32>
    %440 = arith.addf %439, %438 : vector<2x16xf32>
    %441 = arith.divf %439, %440 : vector<2x16xf32>
    %442 = arith.mulf %433, %381 : vector<2x16xf32>
    %443 = arith.mulf %427, %435 : vector<2x16xf32>
    %444 = arith.addf %442, %443 : vector<2x16xf32>
    %445 = math.tanh %444 : vector<2x16xf32>
    %446 = arith.mulf %441, %445 : vector<2x16xf32>
    %447 = arith.index_cast %c6_i32 : i32 to index
    %c0_99 = arith.constant 0 : index
    %c0_100 = arith.constant 0 : index
    %448 = vector.load %arg6[%447, %c0_99, %c0_100] : memref<8x2x16xf32, #tpu.memory_space<vmem>>, vector<1x2x16xf32>
    %449 = vector.shape_cast %448 : vector<1x2x16xf32> to vector<2x16xf32>
    %450 = vector.shape_cast %446 : vector<2x16xf32> to vector<1x2x16xf32>
    tpu.vector_store %arg6[%447, %c0_99, %c0_100], %450 {strides = array<i32>} : memref<8x2x16xf32, #tpu.memory_space<vmem>>, vector<1x2x16xf32>,
    %c7_i32 = arith.constant 7 : i32
    %451 = arith.index_cast %c7_i32 : i32 to index
    %c0_101 = arith.constant 0 : index
    %c0_102 = arith.constant 0 : index
    %452 = vector.load %arg1[%451, %c0_101, %c0_102] : memref<8x2x128xf32, #tpu.memory_space<vmem>>, vector<1x2x128xf32>
    %453 = vector.shape_cast %452 : vector<1x2x128xf32> to vector<2x128xf32>
    %cst_103 = arith.constant dense<0.000000e+00> : vector<2x128xf32>
    %454 = tpu.matmul %417, %0, %cst_103 {dimension_numbers = #tpu.dot_dimension_numbers<[1], [0], [0], [1], [0, 0, 1, 1], [], []>} : vector<2x32xf32>, vector<32x128xf32>, vector<2x128xf32> -> vector<2x128xf32>
    %455 = arith.addf %453, %454 : vector<2x128xf32>
    %456 = vector.extract_strided_slice %455 {offsets = [0, 0], sizes = [2, 32], strides = [1, 1]} : vector<2x128xf32> to vector<2x32xf32>
    %457 = arith.negf %456 : vector<2x32xf32>
    %458 = math.exp %457 : vector<2x32xf32>
    %cst_104 = arith.constant 1.000000e+00 : f32
    %459 = vector.broadcast %cst_104 : f32 to vector<2x32xf32>
    %460 = arith.addf %459, %458 : vector<2x32xf32>
    %461 = arith.divf %459, %460 : vector<2x32xf32>
    %462 = vector.extract_strided_slice %455 {offsets = [0, 32], sizes = [2, 32], strides = [1, 1]} : vector<2x128xf32> to vector<2x32xf32>
    %463 = arith.negf %462 : vector<2x32xf32>
    %464 = math.exp %463 : vector<2x32xf32>
    %cst_105 = arith.constant 1.000000e+00 : f32
    %465 = vector.broadcast %cst_105 : f32 to vector<2x32xf32>
    %466 = arith.addf %465, %464 : vector<2x32xf32>
    %467 = arith.divf %465, %466 : vector<2x32xf32>
    %468 = vector.extract_strided_slice %455 {offsets = [0, 64], sizes = [2, 32], strides = [1, 1]} : vector<2x128xf32> to vector<2x32xf32>
    %469 = math.tanh %468 : vector<2x32xf32>
    %470 = vector.extract_strided_slice %455 {offsets = [0, 96], sizes = [2, 32], strides = [1, 1]} : vector<2x128xf32> to vector<2x32xf32>
    %471 = arith.negf %470 : vector<2x32xf32>
    %472 = math.exp %471 : vector<2x32xf32>
    %cst_106 = arith.constant 1.000000e+00 : f32
    %473 = vector.broadcast %cst_106 : f32 to vector<2x32xf32>
    %474 = arith.addf %473, %472 : vector<2x32xf32>
    %475 = arith.divf %473, %474 : vector<2x32xf32>
    %476 = arith.mulf %467, %415 : vector<2x32xf32>
    %477 = arith.mulf %461, %469 : vector<2x32xf32>
    %478 = arith.addf %476, %477 : vector<2x32xf32>
    %479 = math.tanh %478 : vector<2x32xf32>
    %480 = arith.mulf %475, %479 : vector<2x32xf32>
    %cst_107 = arith.constant dense<0.000000e+00> : vector<2x64xf32>
    %481 = tpu.matmul %480, %1, %cst_107 {dimension_numbers = #tpu.dot_dimension_numbers<[1], [0], [0], [1], [0, 0, 1, 1], [], []>} : vector<2x32xf32>, vector<32x64xf32>, vector<2x64xf32> -> vector<2x64xf32>
    %482 = arith.addf %481, %5 : vector<2x64xf32>
    %cst_108 = arith.constant dense<0.000000e+00> : vector<2x64xf32>
    %483 = tpu.matmul %446, %2, %cst_108 {dimension_numbers = #tpu.dot_dimension_numbers<[1], [0], [0], [1], [0, 0, 1, 1], [], []>} : vector<2x16xf32>, vector<16x64xf32>, vector<2x64xf32> -> vector<2x64xf32>
    %484 = arith.addf %482, %483 : vector<2x64xf32>
    %485 = vector.extract_strided_slice %484 {offsets = [0, 0], sizes = [2, 16], strides = [1, 1]} : vector<2x64xf32> to vector<2x16xf32>
    %486 = arith.negf %485 : vector<2x16xf32>
    %487 = math.exp %486 : vector<2x16xf32>
    %cst_109 = arith.constant 1.000000e+00 : f32
    %488 = vector.broadcast %cst_109 : f32 to vector<2x16xf32>
    %489 = arith.addf %488, %487 : vector<2x16xf32>
    %490 = arith.divf %488, %489 : vector<2x16xf32>
    %491 = vector.extract_strided_slice %484 {offsets = [0, 16], sizes = [2, 16], strides = [1, 1]} : vector<2x64xf32> to vector<2x16xf32>
    %492 = arith.negf %491 : vector<2x16xf32>
    %493 = math.exp %492 : vector<2x16xf32>
    %cst_110 = arith.constant 1.000000e+00 : f32
    %494 = vector.broadcast %cst_110 : f32 to vector<2x16xf32>
    %495 = arith.addf %494, %493 : vector<2x16xf32>
    %496 = arith.divf %494, %495 : vector<2x16xf32>
    %497 = vector.extract_strided_slice %484 {offsets = [0, 32], sizes = [2, 16], strides = [1, 1]} : vector<2x64xf32> to vector<2x16xf32>
    %498 = math.tanh %497 : vector<2x16xf32>
    %499 = vector.extract_strided_slice %484 {offsets = [0, 48], sizes = [2, 16], strides = [1, 1]} : vector<2x64xf32> to vector<2x16xf32>
    %500 = arith.negf %499 : vector<2x16xf32>
    %501 = math.exp %500 : vector<2x16xf32>
    %cst_111 = arith.constant 1.000000e+00 : f32
    %502 = vector.broadcast %cst_111 : f32 to vector<2x16xf32>
    %503 = arith.addf %502, %501 : vector<2x16xf32>
    %504 = arith.divf %502, %503 : vector<2x16xf32>
    %505 = arith.mulf %496, %444 : vector<2x16xf32>
    %506 = arith.mulf %490, %498 : vector<2x16xf32>
    %507 = arith.addf %505, %506 : vector<2x16xf32>
    %508 = math.tanh %507 : vector<2x16xf32>
    %509 = arith.mulf %504, %508 : vector<2x16xf32>
    %510 = arith.index_cast %c7_i32 : i32 to index
    %c0_112 = arith.constant 0 : index
    %c0_113 = arith.constant 0 : index
    %511 = vector.load %arg6[%510, %c0_112, %c0_113] : memref<8x2x16xf32, #tpu.memory_space<vmem>>, vector<1x2x16xf32>
    %512 = vector.shape_cast %511 : vector<1x2x16xf32> to vector<2x16xf32>
    %513 = vector.shape_cast %509 : vector<2x16xf32> to vector<1x2x16xf32>
    tpu.vector_store %arg6[%510, %c0_112, %c0_113], %513 {strides = array<i32>} : memref<8x2x16xf32, #tpu.memory_space<vmem>>, vector<1x2x16xf32>,
    %c8_i32 = arith.constant 8 : i32
    %c0_114 = arith.constant 0 : index
    %c0_115 = arith.constant 0 : index
    %514 = vector.load %arg7[%c0_114, %c0_115] : memref<2x16xf32, #tpu.memory_space<vmem>>, vector<2x16xf32>
    tpu.vector_store %arg7[%c0_114, %c0_115], %509 {strides = array<i32>} : memref<2x16xf32, #tpu.memory_space<vmem>>, vector<2x16xf32>,
    %c0_116 = arith.constant 0 : index
    %c0_117 = arith.constant 0 : index
    %515 = vector.load %arg8[%c0_116, %c0_117] : memref<2x16xf32, #tpu.memory_space<vmem>>, vector<2x16xf32>
    tpu.vector_store %arg8[%c0_116, %c0_117], %507 {strides = array<i32>} : memref<2x16xf32, #tpu.memory_space<vmem>>, vector<2x16xf32>,
    return
  }
  func.func @transform_0(%arg0: i32) -> (i32, i32, i32) {
    %c0_i32 = arith.constant 0 : i32
    %c0_i32_0 = arith.constant 0 : i32
    %c0_i32_1 = arith.constant 0 : i32
    return %c0_i32, %arg0, %c0_i32_0 : i32, i32, i32
  }
  func.func @transform_1(%arg0: i32) -> (i32, i32) {
    %c0_i32 = arith.constant 0 : i32
    %c0_i32_0 = arith.constant 0 : i32
    %c0_i32_1 = arith.constant 0 : i32
    return %c0_i32, %c0_i32_0 : i32, i32
  }
  func.func @transform_2(%arg0: i32) -> (i32, i32) {
    %c0_i32 = arith.constant 0 : i32
    %c0_i32_0 = arith.constant 0 : i32
    %c0_i32_1 = arith.constant 0 : i32
    return %c0_i32, %c0_i32_0 : i32, i32
  }
  func.func @transform_3(%arg0: i32) -> (i32, i32) {
    %c0_i32 = arith.constant 0 : i32
    %c0_i32_0 = arith.constant 0 : i32
    %c0_i32_1 = arith.constant 0 : i32
    return %c0_i32, %c0_i32_0 : i32, i32
  }
  func.func @transform_4(%arg0: i32) -> (i32, i32) {
    %c0_i32 = arith.constant 0 : i32
    %c0_i32_0 = arith.constant 0 : i32
    %c0_i32_1 = arith.constant 0 : i32
    return %c0_i32, %c0_i32_0 : i32, i32
  }
  func.func @transform_5(%arg0: i32) -> (i32, i32, i32) {
    %c0_i32 = arith.constant 0 : i32
    %c0_i32_0 = arith.constant 0 : i32
    %c0_i32_1 = arith.constant 0 : i32
    return %c0_i32, %arg0, %c0_i32_0 : i32, i32, i32
  }
  func.func @transform_6(%arg0: i32) -> (i32, i32) {
    %c0_i32 = arith.constant 0 : i32
    %c0_i32_0 = arith.constant 0 : i32
    return %arg0, %c0_i32 : i32, i32
  }
  func.func @transform_7(%arg0: i32) -> (i32, i32) {
    %c0_i32 = arith.constant 0 : i32
    %c0_i32_0 = arith.constant 0 : i32
    return %arg0, %c0_i32 : i32, i32
  }
}

</mosaic_0001>

<llo_original>
// kernel: encoder_forward.1
$region0: #{encoder_forward.1}
  #allocation0 [shape = 'u32[]', space=smem, size = 0x4, offset = 0x4, fixed_abs, tag = 'smem constant byte address 0x4 - core index']
  #allocation1 [shape = 'u32[144,128]{1,0:T(1,128)}', space=vmem, size = 0x12000, scoped, tag = 'internal scratch']
  %s0 = inlined_call_operand.vmem [shape: f32[8,2,128], index: 0, kind: input, shape index: {}]
  %s1 = inlined_call_operand.vmem [shape: f32[32,128], index: 1, kind: input, shape index: {}]
  %s2 = inlined_call_operand.vmem [shape: f32[32,64], index: 2, kind: input, shape index: {}]
  %s3 = inlined_call_operand.vmem [shape: f32[16,64], index: 3, kind: input, shape index: {}]
  %s4 = inlined_call_operand.vmem [shape: f32[1,64], index: 4, kind: input, shape index: {}]
  %s5 = inlined_call_operand.vmem [shape: f32[8,2,16], index: 5, kind: output, shape index: {0}]
  %s6 = inlined_call_operand.hbm [shape: f32[2,16], index: 6, kind: output, shape index: {1}]
  %s7 = inlined_call_operand.hbm [shape: f32[2,16], index: 7, kind: output, shape index: {2}]
  %8 = xla_tuple %s5, %s6, %s7
  %s9 = sld [smem:[#allocation0]]
  $region46: #{encoder_forward.1} parent=0
    _
  %s11 = ssub.s32 1, %s9
  %s12 = scalar_select 0, %s11, %s9
  $region1: #{encoder_forward.1} parent=0
    #allocation2 [shape = 'u8[1024]{0}', space=vmem, size = 0x400, scoped, tag = 'output window, operand 1, single buffered']
    #allocation3 [shape = 's32[1]{0}', space=sflag, size = 0x4, scoped, tag = 'scoped memory for encoder_forward.1']
    #allocation4 [shape = 'u8[1024]{0}', space=vmem, size = 0x400, scoped, tag = 'output window, operand 2, single buffered']
    #allocation5 [shape = 's32[1]{0}', space=sflag, size = 0x4, scoped, tag = 'scoped memory for encoder_forward.1']
    %13 = vsyncpa [#allocation3], 0
    %14 = vsyncpa [#allocation5], 0
    // Predicated region
    $region2: #{encoder_forward.1} parent=1 // pred_check
      _
    $region3: #{encoder_forward.1} parent=1 // pred_check_branch
      %16 = sbr.rel (0) target = $region5
    $region4: #{encoder_forward.1} parent=1 // pred_region
      _
    $region5: #{encoder_forward.1} parent=1 // pred_fallthru
      _
    // Predicated region
    $region6: #{encoder_forward.1} parent=1 // pred_check
      _
    $region7: #{encoder_forward.1} parent=1 // pred_check_branch
      %18 = sbr.rel (0) target = $region9
    $region8: #{encoder_forward.1} parent=1 // pred_region
      _
    $region9: #{encoder_forward.1} parent=1 // pred_fallthru
      _
    // Predicated region
    $region10: #{encoder_forward.1} parent=1 // pred_check
      _
    $region11: #{encoder_forward.1} parent=1 // pred_check_branch
      %20 = sbr.rel (0) target = $region13
    $region12: #{encoder_forward.1} parent=1 // pred_region
      _
    $region13: #{encoder_forward.1} parent=1 // pred_fallthru
      _
    // Predicated region
    $region14: #{encoder_forward.1} parent=1 // pred_check
      _
    $region15: #{encoder_forward.1} parent=1 // pred_check_branch
      %22 = sbr.rel (0) target = $region17
    $region16: #{encoder_forward.1} parent=1 // pred_region
      _
    $region17: #{encoder_forward.1} parent=1 // pred_fallthru
      _
    // Predicated region
    $region18: #{encoder_forward.1} parent=1 // pred_check
      _
    $region19: #{encoder_forward.1} parent=1 // pred_check_branch
      %24 = sbr.rel (0) target = $region21
    $region20: #{encoder_forward.1} parent=1 // pred_region
      _
    $region21: #{encoder_forward.1} parent=1 // pred_fallthru
      _
    %v25 = vld [vmem:[%s1] sm:$0xff]
    %v26 = vld [vmem:[%s1 + $0x8] sm:$0xff]
    %v27 = vld [vmem:[%s1 + $0x10] sm:$0xff]
    %v28 = vld [vmem:[%s1 + $0x18] sm:$0xff]
    %v29 = vld [vmem:[%s2] sm:$0xff]
    %v30 = vld [vmem:[%s2 + $0x8] sm:$0xff]
    %v31 = vld [vmem:[%s2 + $0x10] sm:$0xff]
    %v32 = vld [vmem:[%s2 + $0x18] sm:$0xff]
    %v33 = vld [vmem:[%s3] sm:$0xff]
    %v34 = vld [vmem:[%s3 + $0x8] sm:$0xff]
    %v35 = vld [vmem:[%s4] sm:$0x1]
    %v37 = vlaneseq
    %v38 = vshrl.u32 %v37, 7
    %v39 = vsub.s32 0, %v38
    %v40 = vrot.slane %v35, %v39
    %v42 = vld [vmem:[%s0] sm:$0x3]
    %vm43 = vcmask 261120
    %v45 = vsel %vm43, 0.0, 0
    %47 = vmatprep.subr.mxu0 0.0
    %48 = vmatpush1.msra.mxu0 %v25
    %49 = vmatprep.subr.mxu0 0.0
    %50 = vmatpush1.msra.mxu0 %v26
    %51 = vmatprep.subr.mxu0 0.0
    %52 = vmatpush1.msra.mxu0 %v27
    %53 = vmatprep.subr.mxu0 0.0
    %54 = vmatpush1.msra.mxu0 %v28
    %55 = vmatprep.subr.mxu0 0.0
    %56 = vmatpush1.msra.mxu0 0.0
    %57 = vmatprep.subr.mxu0 0.0
    %58 = vmatpush1.msra.mxu0 0.0
    %59 = vmatprep.subr.mxu0 0.0
    %60 = vmatpush1.msra.mxu0 0.0
    %61 = vmatprep.subr.mxu0 0.0
    %62 = vmatpush1.msra.mxu0 0.0
    %63 = vmatprep.subr.mxu0 0.0
    %64 = vmatpush1.msra.mxu0 0.0
    %65 = vmatprep.subr.mxu0 0.0
    %66 = vmatpush1.msra.mxu0 0.0
    %67 = vmatprep.subr.mxu0 0.0
    %68 = vmatpush1.msra.mxu0 0.0
    %69 = vmatprep.subr.mxu0 0.0
    %70 = vmatpush1.msra.mxu0 0.0
    %71 = vmatprep.subr.mxu0 0.0
    %72 = vmatpush1.msra.mxu0 0.0
    %73 = vmatprep.subr.mxu0 0.0
    %74 = vmatpush1.msra.mxu0 0.0
    %75 = vmatprep.subr.mxu0 0.0
    %76 = vmatpush1.msra.mxu0 0.0
    %77 = vmatprep.subr.mxu0 0.0
    %78 = vmatpush1.msra.mxu0 0.0
    %79 = vmatprep.subr.mxu0 0.0
    %80 = vmatpush1.msra.mxu0 0.0
    %81 = vmatprep.subr.mxu0 0.0
    %82 = vmatpush1.msra.mxu0 0.0
    %83 = vmatprep.subr.mxu0 0.0
    %84 = vmatpush1.msra.mxu0 0.0
    %85 = vmatprep.subr.mxu0 0.0
    %86 = vmatpush1.msra.mxu0 0.0
    %87 = vmatprep.subr.mxu0 0.0
    %88 = vmatpush1.msra.mxu0 0.0
    %89 = vmatprep.subr.mxu0 0.0
    %90 = vmatpush1.msra.mxu0 0.0
    %91 = vmatprep.subr.mxu0 0.0
    %92 = vmatpush1.msra.mxu0 0.0
    %93 = vmatprep.subr.mxu0 0.0
    %94 = vmatpush1.msra.mxu0 0.0
    %95 = vmatprep.subr.mxu0 0.0
    %96 = vmatpush1.msra.mxu0 0.0
    %97 = vmatprep.subr.mxu0 0.0
    %98 = vmatpush1.msra.mxu0 0.0
    %99 = vmatprep.subr.mxu0 0.0
    %100 = vmatpush1.msra.mxu0 0.0
    %101 = vmatprep.subr.mxu0 0.0
    %102 = vmatpush1.msra.mxu0 0.0
    %103 = vmatprep.subr.mxu0 0.0
    %104 = vmatpush1.msra.mxu0 0.0
    %105 = vmatprep.subr.mxu0 0.0
    %106 = vmatpush1.msra.mxu0 0.0
    %107 = vmatprep.subr.mxu0 0.0
    %108 = vmatpush1.msra.mxu0 0.0
    %109 = vmatprep.subr.mxu0 0.0
    %110 = vmatpush1.msra.mxu0 0.0
    %111 = vmatprep.mubr.f32.mxu0 0.0
    %112 = vmatmul.mubr.f32.gmra.mrb[0].mxu0 %v45
    %v113 = vpop.f32.mrb[0].mxu0
    %v114 = vadd.f32 0.0, %v113
    %v115 = vpop.f32.mrb[0].mxu0
    %116 = vdwg.mxu0
    %v117 = vadd.f32 %v42, %v114
    %v118 = vxor.u32 %v117, 2147483648
    %v119 = vmul.f32 %v118, 1.442695
    %v120 = vpow.pop %v119
    %v121 = vadd.f32 %v120, 1.0
    %v122 = vrcp.pop %v121
    %v123 = vmul.f32 1.0, %v122
    %v124 = vtanh.pop %v117
    %v125 = vmul.f32 %v123, 0.0
    %127 = vrot.lane.b32.xlu0 %v124, 64
    %v128 = vpop.permute.xlu0 %127
    %v130 = vmul.f32 %v123, %v128
    %132 = vrot.lane.b32.xlu0 %v130, 32
    %v133 = vpop.permute.xlu0 %132
    %v135 = vadd.f32 %v125, %v133
    %v136 = vtanh.pop %v135
    %138 = vrot.lane.b32.xlu0 %v136, 64
    %v139 = vpop.permute.xlu0 %138
    %v141 = vmul.f32 %v123, %v139
    %143 = vrot.lane.b32.xlu0 %v141, 32
    %v144 = vpop.permute.xlu0 %143
    %v145 = vsel %vm43, %v144, 0
    %147 = vmatprep.subr.mxu0 0.0
    %148 = vmatpush1.msra.mxu0 %v29
    %149 = vmatprep.subr.mxu0 0.0
    %150 = vmatpush1.msra.mxu0 %v30
    %151 = vmatprep.subr.mxu0 0.0
    %152 = vmatpush1.msra.mxu0 %v31
    %153 = vmatprep.subr.mxu0 0.0
    %154 = vmatpush1.msra.mxu0 %v32
    %155 = vmatprep.subr.mxu0 0.0
    %156 = vmatpush1.msra.mxu0 0.0
    %157 = vmatprep.subr.mxu0 0.0
    %158 = vmatpush1.msra.mxu0 0.0
    %159 = vmatprep.subr.mxu0 0.0
    %160 = vmatpush1.msra.mxu0 0.0
    %161 = vmatprep.subr.mxu0 0.0
    %162 = vmatpush1.msra.mxu0 0.0
    %163 = vmatprep.subr.mxu0 0.0
    %164 = vmatpush1.msra.mxu0 0.0
    %165 = vmatprep.subr.mxu0 0.0
    %166 = vmatpush1.msra.mxu0 0.0
    %167 = vmatprep.subr.mxu0 0.0
    %168 = vmatpush1.msra.mxu0 0.0
    %169 = vmatprep.subr.mxu0 0.0
    %170 = vmatpush1.msra.mxu0 0.0
    %171 = vmatprep.subr.mxu0 0.0
    %172 = vmatpush1.msra.mxu0 0.0
    %173 = vmatprep.subr.mxu0 0.0
    %174 = vmatpush1.msra.mxu0 0.0
    %175 = vmatprep.subr.mxu0 0.0
    %176 = vmatpush1.msra.mxu0 0.0
    %177 = vmatprep.subr.mxu0 0.0
    %178 = vmatpush1.msra.mxu0 0.0
    %179 = vmatprep.subr.mxu0 0.0
    %180 = vmatpush1.msra.mxu0 0.0
    %181 = vmatprep.subr.mxu0 0.0
    %182 = vmatpush1.msra.mxu0 0.0
    %183 = vmatprep.subr.mxu0 0.0
    %184 = vmatpush1.msra.mxu0 0.0
    %185 = vmatprep.subr.mxu0 0.0
    %186 = vmatpush1.msra.mxu0 0.0
    %187 = vmatprep.subr.mxu0 0.0
    %188 = vmatpush1.msra.mxu0 0.0
    %189 = vmatprep.subr.mxu0 0.0
    %190 = vmatpush1.msra.mxu0 0.0
    %191 = vmatprep.subr.mxu0 0.0
    %192 = vmatpush1.msra.mxu0 0.0
    %193 = vmatprep.subr.mxu0 0.0
    %194 = vmatpush1.msra.mxu0 0.0
    %195 = vmatprep.subr.mxu0 0.0
    %196 = vmatpush1.msra.mxu0 0.0
    %197 = vmatprep.subr.mxu0 0.0
    %198 = vmatpush1.msra.mxu0 0.0
    %199 = vmatprep.subr.mxu0 0.0
    %200 = vmatpush1.msra.mxu0 0.0
    %201 = vmatprep.subr.mxu0 0.0
    %202 = vmatpush1.msra.mxu0 0.0
    %203 = vmatprep.subr.mxu0 0.0
    %204 = vmatpush1.msra.mxu0 0.0
    %205 = vmatprep.subr.mxu0 0.0
    %206 = vmatpush1.msra.mxu0 0.0
    %207 = vmatprep.subr.mxu0 0.0
    %208 = vmatpush1.msra.mxu0 0.0
    %209 = vmatprep.subr.mxu0 0.0
    %210 = vmatpush1.msra.mxu0 0.0
    %211 = vmatprep.mubr.f32.mxu0 0.0
    %212 = vmatmul.mubr.f32.gmra.mrb[0].mxu0 %v145
    %v213 = vpop.f32.mrb[0].mxu0
    %v214 = vadd.f32 %v40, %v213
    %v215 = vpop.f32.mrb[0].mxu0
    %216 = vdwg.mxu0
    %vm217 = vcmask 130048
    %v218 = vsel %vm217, 0.0, 0
    %220 = vmatprep.subr.mxu0 0.0
    %221 = vmatpush1.msra.mxu0 %v33
    %222 = vmatprep.subr.mxu0 0.0
    %223 = vmatpush1.msra.mxu0 %v34
    %224 = vmatprep.subr.mxu0 0.0
    %225 = vmatpush1.msra.mxu0 0.0
    %226 = vmatprep.subr.mxu0 0.0
    %227 = vmatpush1.msra.mxu0 0.0
    %228 = vmatprep.subr.mxu0 0.0
    %229 = vmatpush1.msra.mxu0 0.0
    %230 = vmatprep.subr.mxu0 0.0
    %231 = vmatpush1.msra.mxu0 0.0
    %232 = vmatprep.subr.mxu0 0.0
    %233 = vmatpush1.msra.mxu0 0.0
    %234 = vmatprep.subr.mxu0 0.0
    %235 = vmatpush1.msra.mxu0 0.0
    %236 = vmatprep.subr.mxu0 0.0
    %237 = vmatpush1.msra.mxu0 0.0
    %238 = vmatprep.subr.mxu0 0.0
    %239 = vmatpush1.msra.mxu0 0.0
    %240 = vmatprep.subr.mxu0 0.0
    %241 = vmatpush1.msra.mxu0 0.0
    %242 = vmatprep.subr.mxu0 0.0
    %243 = vmatpush1.msra.mxu0 0.0
    %244 = vmatprep.subr.mxu0 0.0
    %245 = vmatpush1.msra.mxu0 0.0
    %246 = vmatprep.subr.mxu0 0.0
    %247 = vmatpush1.msra.mxu0 0.0
    %248 = vmatprep.subr.mxu0 0.0
    %249 = vmatpush1.msra.mxu0 0.0
    %250 = vmatprep.subr.mxu0 0.0
    %251 = vmatpush1.msra.mxu0 0.0
    %252 = vmatprep.subr.mxu0 0.0
    %253 = vmatpush1.msra.mxu0 0.0
    %254 = vmatprep.subr.mxu0 0.0
    %255 = vmatpush1.msra.mxu0 0.0
    %256 = vmatprep.subr.mxu0 0.0
    %257 = vmatpush1.msra.mxu0 0.0
    %258 = vmatprep.subr.mxu0 0.0
    %259 = vmatpush1.msra.mxu0 0.0
    %260 = vmatprep.subr.mxu0 0.0
    %261 = vmatpush1.msra.mxu0 0.0
    %262 = vmatprep.subr.mxu0 0.0
    %263 = vmatpush1.msra.mxu0 0.0
    %264 = vmatprep.subr.mxu0 0.0
    %265 = vmatpush1.msra.mxu0 0.0
    %266 = vmatprep.subr.mxu0 0.0
    %267 = vmatpush1.msra.mxu0 0.0
    %268 = vmatprep.subr.mxu0 0.0
    %269 = vmatpush1.msra.mxu0 0.0
    %270 = vmatprep.subr.mxu0 0.0
    %271 = vmatpush1.msra.mxu0 0.0
    %272 = vmatprep.subr.mxu0 0.0
    %273 = vmatpush1.msra.mxu0 0.0
    %274 = vmatprep.subr.mxu0 0.0
    %275 = vmatpush1.msra.mxu0 0.0
    %276 = vmatprep.subr.mxu0 0.0
    %277 = vmatpush1.msra.mxu0 0.0
    %278 = vmatprep.subr.mxu0 0.0
    %279 = vmatpush1.msra.mxu0 0.0
    %280 = vmatprep.subr.mxu0 0.0
    %281 = vmatpush1.msra.mxu0 0.0
    %282 = vmatprep.subr.mxu0 0.0
    %283 = vmatpush1.msra.mxu0 0.0
    %284 = vmatprep.mubr.f32.mxu0 0.0
    %285 = vmatmul.mubr.f32.gmra.mrb[0].mxu0 %v218
    %v286 = vpop.f32.mrb[0].mxu0
    %v287 = vadd.f32 0.0, %v286
    %v288 = vpop.f32.mrb[0].mxu0
    %289 = vdwg.mxu0
    %v290 = vadd.f32 %v214, %v287
    %v291 = vxor.u32 %v290, 2147483648
    %v292 = vmul.f32 %v291, 1.442695
    %v293 = vpow.pop %v292
    %v294 = vadd.f32 %v293, 1.0
    %v295 = vrcp.pop %v294
    %v296 = vmul.f32 1.0, %v295
    %v297 = vtanh.pop %v290
    %v298 = vmul.f32 %v296, 0.0
    %300 = vrot.lane.b32.xlu0 %v297, 96
    %v301 = vpop.permute.xlu0 %300
    %v303 = vmul.f32 %v296, %v301
    %305 = vrot.lane.b32.xlu0 %v303, 16
    %v306 = vpop.permute.xlu0 %305
    %v308 = vadd.f32 %v298, %v306
    %v309 = vtanh.pop %v308
    %311 = vrot.lane.b32.xlu0 %v309, 32
    %v312 = vpop.permute.xlu0 %311
    %v314 = vmul.f32 %v296, %v312
    %316 = vrot.lane.b32.xlu0 %v314, 80
    %v317 = vpop.permute.xlu0 %316
    %vm319 = vcmask 123904
    %320 = vst.msk [vmem:[%s5] sm:$0x3] %vm319, %v317
    %s321 = scalar_lea.vmem %s0, 2
    %v322 = vld [vmem:[%s321] sm:$0x3]
    %323 = vmatprep.subr.mxu0 0.0
    %324 = vmatpush1.msra.mxu0 %v25
    %325 = vmatprep.subr.mxu0 0.0
    %326 = vmatpush1.msra.mxu0 %v26
    %327 = vmatprep.subr.mxu0 0.0
    %328 = vmatpush1.msra.mxu0 %v27
    %329 = vmatprep.subr.mxu0 0.0
    %330 = vmatpush1.msra.mxu0 %v28
    %331 = vmatprep.subr.mxu0 0.0
    %332 = vmatpush1.msra.mxu0 0.0
    %333 = vmatprep.subr.mxu0 0.0
    %334 = vmatpush1.msra.mxu0 0.0
    %335 = vmatprep.subr.mxu0 0.0
    %336 = vmatpush1.msra.mxu0 0.0
    %337 = vmatprep.subr.mxu0 0.0
    %338 = vmatpush1.msra.mxu0 0.0
    %339 = vmatprep.subr.mxu0 0.0
    %340 = vmatpush1.msra.mxu0 0.0
    %341 = vmatprep.subr.mxu0 0.0
    %342 = vmatpush1.msra.mxu0 0.0
    %343 = vmatprep.subr.mxu0 0.0
    %344 = vmatpush1.msra.mxu0 0.0
    %345 = vmatprep.subr.mxu0 0.0
    %346 = vmatpush1.msra.mxu0 0.0
    %347 = vmatprep.subr.mxu0 0.0
    %348 = vmatpush1.msra.mxu0 0.0
    %349 = vmatprep.subr.mxu0 0.0
    %350 = vmatpush1.msra.mxu0 0.0
    %351 = vmatprep.subr.mxu0 0.0
    %352 = vmatpush1.msra.mxu0 0.0
    %353 = vmatprep.subr.mxu0 0.0
    %354 = vmatpush1.msra.mxu0 0.0
    %355 = vmatprep.subr.mxu0 0.0
    %356 = vmatpush1.msra.mxu0 0.0
    %357 = vmatprep.subr.mxu0 0.0
    %358 = vmatpush1.msra.mxu0 0.0
    %359 = vmatprep.subr.mxu0 0.0
    %360 = vmatpush1.msra.mxu0 0.0
    %361 = vmatprep.subr.mxu0 0.0
    %362 = vmatpush1.msra.mxu0 0.0
    %363 = vmatprep.subr.mxu0 0.0
    %364 = vmatpush1.msra.mxu0 0.0
    %365 = vmatprep.subr.mxu0 0.0
    %366 = vmatpush1.msra.mxu0 0.0
    %367 = vmatprep.subr.mxu0 0.0
    %368 = vmatpush1.msra.mxu0 0.0
    %369 = vmatprep.subr.mxu0 0.0
    %370 = vmatpush1.msra.mxu0 0.0
    %371 = vmatprep.subr.mxu0 0.0
    %372 = vmatpush1.msra.mxu0 0.0
    %373 = vmatprep.subr.mxu0 0.0
    %374 = vmatpush1.msra.mxu0 0.0
    %375 = vmatprep.subr.mxu0 0.0
    %376 = vmatpush1.msra.mxu0 0.0
    %377 = vmatprep.subr.mxu0 0.0
    %378 = vmatpush1.msra.mxu0 0.0
    %379 = vmatprep.subr.mxu0 0.0
    %380 = vmatpush1.msra.mxu0 0.0
    %381 = vmatprep.subr.mxu0 0.0
    %382 = vmatpush1.msra.mxu0 0.0
    %383 = vmatprep.subr.mxu0 0.0
    %384 = vmatpush1.msra.mxu0 0.0
    %385 = vmatprep.subr.mxu0 0.0
    %386 = vmatpush1.msra.mxu0 0.0
    %387 = vmatprep.mubr.f32.mxu0 0.0
    %388 = vmatmul.mubr.f32.gmra.mrb[0].mxu0 %v145
    %v389 = vpop.f32.mrb[0].mxu0
    %v390 = vadd.f32 0.0, %v389
    %v391 = vpop.f32.mrb[0].mxu0
    %392 = vdwg.mxu0
    %v393 = vadd.f32 %v322, %v390
    %v394 = vxor.u32 %v393, 2147483648
    %v395 = vmul.f32 %v394, 1.442695
    %v396 = vpow.pop %v395
    %v397 = vadd.f32 %v396, 1.0
    %v398 = vrcp.pop %v397
    %v399 = vmul.f32 1.0, %v398
    %v400 = vtanh.pop %v393
    %v401 = vmul.f32 %v399, %v135
    %403 = vrot.lane.b32.xlu0 %v400, 64
    %v404 = vpop.permute.xlu0 %403
    %v406 = vmul.f32 %v399, %v404
    %408 = vrot.lane.b32.xlu0 %v406, 32
    %v409 = vpop.permute.xlu0 %408
    %v411 = vadd.f32 %v401, %v409
    %v412 = vtanh.pop %v411
    %414 = vrot.lane.b32.xlu0 %v412, 64
    %v415 = vpop.permute.xlu0 %414
    %v417 = vmul.f32 %v399, %v415
    %419 = vrot.lane.b32.xlu0 %v417, 32
    %v420 = vpop.permute.xlu0 %419
    %v421 = vsel %vm43, %v420, 0
    %423 = vmatprep.subr.mxu0 0.0
    %424 = vmatpush1.msra.mxu0 %v29
    %425 = vmatprep.subr.mxu0 0.0
    %426 = vmatpush1.msra.mxu0 %v30
    %427 = vmatprep.subr.mxu0 0.0
    %428 = vmatpush1.msra.mxu0 %v31
    %429 = vmatprep.subr.mxu0 0.0
    %430 = vmatpush1.msra.mxu0 %v32
    %431 = vmatprep.subr.mxu0 0.0
    %432 = vmatpush1.msra.mxu0 0.0
    %433 = vmatprep.subr.mxu0 0.0
    %434 = vmatpush1.msra.mxu0 0.0
    %435 = vmatprep.subr.mxu0 0.0
    %436 = vmatpush1.msra.mxu0 0.0
    %437 = vmatprep.subr.mxu0 0.0
    %438 = vmatpush1.msra.mxu0 0.0
    %439 = vmatprep.subr.mxu0 0.0
    %440 = vmatpush1.msra.mxu0 0.0
    %441 = vmatprep.subr.mxu0 0.0
    %442 = vmatpush1.msra.mxu0 0.0
    %443 = vmatprep.subr.mxu0 0.0
    %444 = vmatpush1.msra.mxu0 0.0
    %445 = vmatprep.subr.mxu0 0.0
    %446 = vmatpush1.msra.mxu0 0.0
    %447 = vmatprep.subr.mxu0 0.0
    %448 = vmatpush1.msra.mxu0 0.0
    %449 = vmatprep.subr.mxu0 0.0
    %450 = vmatpush1.msra.mxu0 0.0
    %451 = vmatprep.subr.mxu0 0.0
    %452 = vmatpush1.msra.mxu0 0.0
    %453 = vmatprep.subr.mxu0 0.0
    %454 = vmatpush1.msra.mxu0 0.0
    %455 = vmatprep.subr.mxu0 0.0
    %456 = vmatpush1.msra.mxu0 0.0
    %457 = vmatprep.subr.mxu0 0.0
    %458 = vmatpush1.msra.mxu0 0.0
    %459 = vmatprep.subr.mxu0 0.0
    %460 = vmatpush1.msra.mxu0 0.0
    %461 = vmatprep.subr.mxu0 0.0
    %462 = vmatpush1.msra.mxu0 0.0
    %463 = vmatprep.subr.mxu0 0.0
    %464 = vmatpush1.msra.mxu0 0.0
    %465 = vmatprep.subr.mxu0 0.0
    %466 = vmatpush1.msra.mxu0 0.0
    %467 = vmatprep.subr.mxu0 0.0
    %468 = vmatpush1.msra.mxu0 0.0
    %469 = vmatprep.subr.mxu0 0.0
    %470 = vmatpush1.msra.mxu0 0.0
    %471 = vmatprep.subr.mxu0 0.0
    %472 = vmatpush1.msra.mxu0 0.0
    %473 = vmatprep.subr.mxu0 0.0
    %474 = vmatpush1.msra.mxu0 0.0
    %475 = vmatprep.subr.mxu0 0.0
    %476 = vmatpush1.msra.mxu0 0.0
    %477 = vmatprep.subr.mxu0 0.0
    %478 = vmatpush1.msra.mxu0 0.0
    %479 = vmatprep.subr.mxu0 0.0
    %480 = vmatpush1.msra.mxu0 0.0
    %481 = vmatprep.subr.mxu0 0.0
    %482 = vmatpush1.msra.mxu0 0.0
    %483 = vmatprep.subr.mxu0 0.0
    %484 = vmatpush1.msra.mxu0 0.0
    %485 = vmatprep.subr.mxu0 0.0
    %486 = vmatpush1.msra.mxu0 0.0
    %487 = vmatprep.mubr.f32.mxu0 0.0
    %488 = vmatmul.mubr.f32.gmra.mrb[0].mxu0 %v421
    %v489 = vpop.f32.mrb[0].mxu0
    %v490 = vadd.f32 %v40, %v489
    %v491 = vpop.f32.mrb[0].mxu0
    %492 = vdwg.mxu0
    %v493 = vsel %vm217, %v317, 0
    %495 = vmatprep.subr.mxu0 0.0
    %496 = vmatpush1.msra.mxu0 %v33
    %497 = vmatprep.subr.mxu0 0.0
    %498 = vmatpush1.msra.mxu0 %v34
    %499 = vmatprep.subr.mxu0 0.0
    %500 = vmatpush1.msra.mxu0 0.0
    %501 = vmatprep.subr.mxu0 0.0
    %502 = vmatpush1.msra.mxu0 0.0
    %503 = vmatprep.subr.mxu0 0.0
    %504 = vmatpush1.msra.mxu0 0.0
    %505 = vmatprep.subr.mxu0 0.0
    %506 = vmatpush1.msra.mxu0 0.0
    %507 = vmatprep.subr.mxu0 0.0
    %508 = vmatpush1.msra.mxu0 0.0
    %509 = vmatprep.subr.mxu0 0.0
    %510 = vmatpush1.msra.mxu0 0.0
    %511 = vmatprep.subr.mxu0 0.0
    %512 = vmatpush1.msra.mxu0 0.0
    %513 = vmatprep.subr.mxu0 0.0
    %514 = vmatpush1.msra.mxu0 0.0
    %515 = vmatprep.subr.mxu0 0.0
    %516 = vmatpush1.msra.mxu0 0.0
    %517 = vmatprep.subr.mxu0 0.0
    %518 = vmatpush1.msra.mxu0 0.0
    %519 = vmatprep.subr.mxu0 0.0
    %520 = vmatpush1.msra.mxu0 0.0
    %521 = vmatprep.subr.mxu0 0.0
    %522 = vmatpush1.msra.mxu0 0.0
    %523 = vmatprep.subr.mxu0 0.0
    %524 = vmatpush1.msra.mxu0 0.0
    %525 = vmatprep.subr.mxu0 0.0
    %526 = vmatpush1.msra.mxu0 0.0
    %527 = vmatprep.subr.mxu0 0.0
    %528 = vmatpush1.msra.mxu0 0.0
    %529 = vmatprep.subr.mxu0 0.0
    %530 = vmatpush1.msra.mxu0 0.0
    %531 = vmatprep.subr.mxu0 0.0
    %532 = vmatpush1.msra.mxu0 0.0
    %533 = vmatprep.subr.mxu0 0.0
    %534 = vmatpush1.msra.mxu0 0.0
    %535 = vmatprep.subr.mxu0 0.0
    %536 = vmatpush1.msra.mxu0 0.0
    %537 = vmatprep.subr.mxu0 0.0
    %538 = vmatpush1.msra.mxu0 0.0
    %539 = vmatprep.subr.mxu0 0.0
    %540 = vmatpush1.msra.mxu0 0.0
    %541 = vmatprep.subr.mxu0 0.0
    %542 = vmatpush1.msra.mxu0 0.0
    %543 = vmatprep.subr.mxu0 0.0
    %544 = vmatpush1.msra.mxu0 0.0
    %545 = vmatprep.subr.mxu0 0.0
    %546 = vmatpush1.msra.mxu0 0.0
    %547 = vmatprep.subr.mxu0 0.0
    %548 = vmatpush1.msra.mxu0 0.0
    %549 = vmatprep.subr.mxu0 0.0
    %550 = vmatpush1.msra.mxu0 0.0
    %551 = vmatprep.subr.mxu0 0.0
    %552 = vmatpush1.msra.mxu0 0.0
    %553 = vmatprep.subr.mxu0 0.0
    %554 = vmatpush1.msra.mxu0 0.0
    %555 = vmatprep.subr.mxu0 0.0
    %556 = vmatpush1.msra.mxu0 0.0
    %557 = vmatprep.subr.mxu0 0.0
    %558 = vmatpush1.msra.mxu0 0.0
    %559 = vmatprep.mubr.f32.mxu0 0.0
    %560 = vmatmul.mubr.f32.gmra.mrb[0].mxu0 %v493
    %v561 = vpop.f32.mrb[0].mxu0
    %v562 = vadd.f32 0.0, %v561
    %v563 = vpop.f32.mrb[0].mxu0
    %564 = vdwg.mxu0
    %v565 = vadd.f32 %v490, %v562
    %v566 = vxor.u32 %v565, 2147483648
    %v567 = vmul.f32 %v566, 1.442695
    %v568 = vpow.pop %v567
    %v569 = vadd.f32 %v568, 1.0
    %v570 = vrcp.pop %v569
    %v571 = vmul.f32 1.0, %v570
    %v572 = vtanh.pop %v565
    %v573 = vmul.f32 %v571, %v308
    %575 = vrot.lane.b32.xlu0 %v572, 96
    %v576 = vpop.permute.xlu0 %575
    %v578 = vmul.f32 %v571, %v576
    %580 = vrot.lane.b32.xlu0 %v578, 16
    %v581 = vpop.permute.xlu0 %580
    %v583 = vadd.f32 %v573, %v581
    %v584 = vtanh.pop %v583
    %586 = vrot.lane.b32.xlu0 %v584, 32
    %v587 = vpop.permute.xlu0 %586
    %v589 = vmul.f32 %v571, %v587
    %591 = vrot.lane.b32.xlu0 %v589, 80
    %v592 = vpop.permute.xlu0 %591
    %s594 = scalar_lea.vmem %s5, 2
    %595 = vst.msk [vmem:[%s594] sm:$0x3] %vm319, %v592
    %s596 = scalar_lea.vmem %s0, 4
    %v597 = vld [vmem:[%s596] sm:$0x3]
    %598 = vmatprep.subr.mxu0 0.0
    %599 = vmatpush1.msra.mxu0 %v25
    %600 = vmatprep.subr.mxu0 0.0
    %601 = vmatpush1.msra.mxu0 %v26
    %602 = vmatprep.subr.mxu0 0.0
    %603 = vmatpush1.msra.mxu0 %v27
    %604 = vmatprep.subr.mxu0 0.0
    %605 = vmatpush1.msra.mxu0 %v28
    %606 = vmatprep.subr.mxu0 0.0
    %607 = vmatpush1.msra.mxu0 0.0
    %608 = vmatprep.subr.mxu0 0.0
    %609 = vmatpush1.msra.mxu0 0.0
    %610 = vmatprep.subr.mxu0 0.0
    %611 = vmatpush1.msra.mxu0 0.0
    %612 = vmatprep.subr.mxu0 0.0
    %613 = vmatpush1.msra.mxu0 0.0
    %614 = vmatprep.subr.mxu0 0.0
    %615 = vmatpush1.msra.mxu0 0.0
    %616 = vmatprep.subr.mxu0 0.0
    %617 = vmatpush1.msra.mxu0 0.0
    %618 = vmatprep.subr.mxu0 0.0
    %619 = vmatpush1.msra.mxu0 0.0
    %620 = vmatprep.subr.mxu0 0.0
    %621 = vmatpush1.msra.mxu0 0.0
    %622 = vmatprep.subr.mxu0 0.0
    %623 = vmatpush1.msra.mxu0 0.0
    %624 = vmatprep.subr.mxu0 0.0
    %625 = vmatpush1.msra.mxu0 0.0
    %626 = vmatprep.subr.mxu0 0.0
    %627 = vmatpush1.msra.mxu0 0.0
    %628 = vmatprep.subr.mxu0 0.0
    %629 = vmatpush1.msra.mxu0 0.0
    %630 = vmatprep.subr.mxu0 0.0
    %631 = vmatpush1.msra.mxu0 0.0
    %632 = vmatprep.subr.mxu0 0.0
    %633 = vmatpush1.msra.mxu0 0.0
    %634 = vmatprep.subr.mxu0 0.0
    %635 = vmatpush1.msra.mxu0 0.0
    %636 = vmatprep.subr.mxu0 0.0
    %637 = vmatpush1.msra.mxu0 0.0
    %638 = vmatprep.subr.mxu0 0.0
    %639 = vmatpush1.msra.mxu0 0.0
    %640 = vmatprep.subr.mxu0 0.0
    %641 = vmatpush1.msra.mxu0 0.0
    %642 = vmatprep.subr.mxu0 0.0
    %643 = vmatpush1.msra.mxu0 0.0
    %644 = vmatprep.subr.mxu0 0.0
    %645 = vmatpush1.msra.mxu0 0.0
    %646 = vmatprep.subr.mxu0 0.0
    %647 = vmatpush1.msra.mxu0 0.0
    %648 = vmatprep.subr.mxu0 0.0
    %649 = vmatpush1.msra.mxu0 0.0
    %650 = vmatprep.subr.mxu0 0.0
    %651 = vmatpush1.msra.mxu0 0.0
    %652 = vmatprep.subr.mxu0 0.0
    %653 = vmatpush1.msra.mxu0 0.0
    %654 = vmatprep.subr.mxu0 0.0
    %655 = vmatpush1.msra.mxu0 0.0
    %656 = vmatprep.subr.mxu0 0.0
    %657 = vmatpush1.msra.mxu0 0.0
    %658 = vmatprep.subr.mxu0 0.0
    %659 = vmatpush1.msra.mxu0 0.0
    %660 = vmatprep.subr.mxu0 0.0
    %661 = vmatpush1.msra.mxu0 0.0
    %662 = vmatprep.mubr.f32.mxu0 0.0
    %663 = vmatmul.mubr.f32.gmra.mrb[0].mxu0 %v421
    %v664 = vpop.f32.mrb[0].mxu0
    %v665 = vadd.f32 0.0, %v664
    %v666 = vpop.f32.mrb[0].mxu0
    %667 = vdwg.mxu0
    %v668 = vadd.f32 %v597, %v665
    %v669 = vxor.u32 %v668, 2147483648
    %v670 = vmul.f32 %v669, 1.442695
    %v671 = vpow.pop %v670
    %v672 = vadd.f32 %v671, 1.0
    %v673 = vrcp.pop %v672
    %v674 = vmul.f32 1.0, %v673
    %v675 = vtanh.pop %v668
    %v676 = vmul.f32 %v674, %v411
    %678 = vrot.lane.b32.xlu0 %v675, 64
    %v679 = vpop.permute.xlu0 %678
    %v681 = vmul.f32 %v674, %v679
    %683 = vrot.lane.b32.xlu0 %v681, 32
    %v684 = vpop.permute.xlu0 %683
    %v686 = vadd.f32 %v676, %v684
    %v687 = vtanh.pop %v686
    %689 = vrot.lane.b32.xlu0 %v687, 64
    %v690 = vpop.permute.xlu0 %689
    %v692 = vmul.f32 %v674, %v690
    %694 = vrot.lane.b32.xlu0 %v692, 32
    %v695 = vpop.permute.xlu0 %694
    %v696 = vsel %vm43, %v695, 0
    %698 = vmatprep.subr.mxu0 0.0
    %699 = vmatpush1.msra.mxu0 %v29
    %700 = vmatprep.subr.mxu0 0.0
    %701 = vmatpush1.msra.mxu0 %v30
    %702 = vmatprep.subr.mxu0 0.0
    %703 = vmatpush1.msra.mxu0 %v31
    %704 = vmatprep.subr.mxu0 0.0
    %705 = vmatpush1.msra.mxu0 %v32
    %706 = vmatprep.subr.mxu0 0.0
    %707 = vmatpush1.msra.mxu0 0.0
    %708 = vmatprep.subr.mxu0 0.0
    %709 = vmatpush1.msra.mxu0 0.0
    %710 = vmatprep.subr.mxu0 0.0
    %711 = vmatpush1.msra.mxu0 0.0
    %712 = vmatprep.subr.mxu0 0.0
    %713 = vmatpush1.msra.mxu0 0.0
    %714 = vmatprep.subr.mxu0 0.0
    %715 = vmatpush1.msra.mxu0 0.0
    %716 = vmatprep.subr.mxu0 0.0
    %717 = vmatpush1.msra.mxu0 0.0
    %718 = vmatprep.subr.mxu0 0.0
    %719 = vmatpush1.msra.mxu0 0.0
    %720 = vmatprep.subr.mxu0 0.0
    %721 = vmatpush1.msra.mxu0 0.0
    %722 = vmatprep.subr.mxu0 0.0
    %723 = vmatpush1.msra.mxu0 0.0
    %724 = vmatprep.subr.mxu0 0.0
    %725 = vmatpush1.msra.mxu0 0.0
    %726 = vmatprep.subr.mxu0 0.0
    %727 = vmatpush1.msra.mxu0 0.0
    %728 = vmatprep.subr.mxu0 0.0
    %729 = vmatpush1.msra.mxu0 0.0
    %730 = vmatprep.subr.mxu0 0.0
    %731 = vmatpush1.msra.mxu0 0.0
    %732 = vmatprep.subr.mxu0 0.0
    %733 = vmatpush1.msra.mxu0 0.0
    %734 = vmatprep.subr.mxu0 0.0
    %735 = vmatpush1.msra.mxu0 0.0
    %736 = vmatprep.subr.mxu0 0.0
    %737 = vmatpush1.msra.mxu0 0.0
    %738 = vmatprep.subr.mxu0 0.0
    %739 = vmatpush1.msra.mxu0 0.0
    %740 = vmatprep.subr.mxu0 0.0
    %741 = vmatpush1.msra.mxu0 0.0
    %742 = vmatprep.subr.mxu0 0.0
    %743 = vmatpush1.msra.mxu0 0.0
    %744 = vmatprep.subr.mxu0 0.0
    %745 = vmatpush1.msra.mxu0 0.0
    %746 = vmatprep.subr.mxu0 0.0
    %747 = vmatpush1.msra.mxu0 0.0
    %748 = vmatprep.subr.mxu0 0.0
    %749 = vmatpush1.msra.mxu0 0.0
    %750 = vmatprep.subr.mxu0 0.0
    %751 = vmatpush1.msra.mxu0 0.0
    %752 = vmatprep.subr.mxu0 0.0
    %753 = vmatpush1.msra.mxu0 0.0
    %754 = vmatprep.subr.mxu0 0.0
    %755 = vmatpush1.msra.mxu0 0.0
    %756 = vmatprep.subr.mxu0 0.0
    %757 = vmatpush1.msra.mxu0 0.0
    %758 = vmatprep.subr.mxu0 0.0
    %759 = vmatpush1.msra.mxu0 0.0
    %760 = vmatprep.subr.mxu0 0.0
    %761 = vmatpush1.msra.mxu0 0.0
    %762 = vmatprep.mubr.f32.mxu0 0.0
    %763 = vmatmul.mubr.f32.gmra.mrb[0].mxu0 %v696
    %v764 = vpop.f32.mrb[0].mxu0
    %v765 = vadd.f32 %v40, %v764
    %v766 = vpop.f32.mrb[0].mxu0
    %767 = vdwg.mxu0
    %v768 = vsel %vm217, %v592, 0
    %770 = vmatprep.subr.mxu0 0.0
    %771 = vmatpush1.msra.mxu0 %v33
    %772 = vmatprep.subr.mxu0 0.0
    %773 = vmatpush1.msra.mxu0 %v34
    %774 = vmatprep.subr.mxu0 0.0
    %775 = vmatpush1.msra.mxu0 0.0
    %776 = vmatprep.subr.mxu0 0.0
    %777 = vmatpush1.msra.mxu0 0.0
    %778 = vmatprep.subr.mxu0 0.0
    %779 = vmatpush1.msra.mxu0 0.0
    %780 = vmatprep.subr.mxu0 0.0
    %781 = vmatpush1.msra.mxu0 0.0
    %782 = vmatprep.subr.mxu0 0.0
    %783 = vmatpush1.msra.mxu0 0.0
    %784 = vmatprep.subr.mxu0 0.0
    %785 = vmatpush1.msra.mxu0 0.0
    %786 = vmatprep.subr.mxu0 0.0
    %787 = vmatpush1.msra.mxu0 0.0
    %788 = vmatprep.subr.mxu0 0.0
    %789 = vmatpush1.msra.mxu0 0.0
    %790 = vmatprep.subr.mxu0 0.0
    %791 = vmatpush1.msra.mxu0 0.0
    %792 = vmatprep.subr.mxu0 0.0
    %793 = vmatpush1.msra.mxu0 0.0
    %794 = vmatprep.subr.mxu0 0.0
    %795 = vmatpush1.msra.mxu0 0.0
    %796 = vmatprep.subr.mxu0 0.0
    %797 = vmatpush1.msra.mxu0 0.0
    %798 = vmatprep.subr.mxu0 0.0
    %799 = vmatpush1.msra.mxu0 0.0
    %800 = vmatprep.subr.mxu0 0.0
    %801 = vmatpush1.msra.mxu0 0.0
    %802 = vmatprep.subr.mxu0 0.0
    %803 = vmatpush1.msra.mxu0 0.0
    %804 = vmatprep.subr.mxu0 0.0
    %805 = vmatpush1.msra.mxu0 0.0
    %806 = vmatprep.subr.mxu0 0.0
    %807 = vmatpush1.msra.mxu0 0.0
    %808 = vmatprep.subr.mxu0 0.0
    %809 = vmatpush1.msra.mxu0 0.0
    %810 = vmatprep.subr.mxu0 0.0
    %811 = vmatpush1.msra.mxu0 0.0
    %812 = vmatprep.subr.mxu0 0.0
    %813 = vmatpush1.msra.mxu0 0.0
    %814 = vmatprep.subr.mxu0 0.0
    %815 = vmatpush1.msra.mxu0 0.0
    %816 = vmatprep.subr.mxu0 0.0
    %817 = vmatpush1.msra.mxu0 0.0
    %818 = vmatprep.subr.mxu0 0.0
    %819 = vmatpush1.msra.mxu0 0.0
    %820 = vmatprep.subr.mxu0 0.0
    %821 = vmatpush1.msra.mxu0 0.0
    %822 = vmatprep.subr.mxu0 0.0
    %823 = vmatpush1.msra.mxu0 0.0
    %824 = vmatprep.subr.mxu0 0.0
    %825 = vmatpush1.msra.mxu0 0.0
    %826 = vmatprep.subr.mxu0 0.0
    %827 = vmatpush1.msra.mxu0 0.0
    %828 = vmatprep.subr.mxu0 0.0
    %829 = vmatpush1.msra.mxu0 0.0
    %830 = vmatprep.subr.mxu0 0.0
    %831 = vmatpush1.msra.mxu0 0.0
    %832 = vmatprep.subr.mxu0 0.0
    %833 = vmatpush1.msra.mxu0 0.0
    %834 = vmatprep.mubr.f32.mxu0 0.0
    %835 = vmatmul.mubr.f32.gmra.mrb[0].mxu0 %v768
    %v836 = vpop.f32.mrb[0].mxu0
    %v837 = vadd.f32 0.0, %v836
    %v838 = vpop.f32.mrb[0].mxu0
    %839 = vdwg.mxu0
    %v840 = vadd.f32 %v765, %v837
    %v841 = vxor.u32 %v840, 2147483648
    %v842 = vmul.f32 %v841, 1.442695
    %v843 = vpow.pop %v842
    %v844 = vadd.f32 %v843, 1.0
    %v845 = vrcp.pop %v844
    %v846 = vmul.f32 1.0, %v845
    %v847 = vtanh.pop %v840
    %v848 = vmul.f32 %v846, %v583
    %850 = vrot.lane.b32.xlu0 %v847, 96
    %v851 = vpop.permute.xlu0 %850
    %v853 = vmul.f32 %v846, %v851
    %855 = vrot.lane.b32.xlu0 %v853, 16
    %v856 = vpop.permute.xlu0 %855
    %v858 = vadd.f32 %v848, %v856
    %v859 = vtanh.pop %v858
    %861 = vrot.lane.b32.xlu0 %v859, 32
    %v862 = vpop.permute.xlu0 %861
    %v864 = vmul.f32 %v846, %v862
    %866 = vrot.lane.b32.xlu0 %v864, 80
    %v867 = vpop.permute.xlu0 %866
    %s869 = scalar_lea.vmem %s5, 4
    %870 = vst.msk [vmem:[%s869] sm:$0x3] %vm319, %v867
    %s871 = scalar_lea.vmem %s0, 6
    %v872 = vld [vmem:[%s871] sm:$0x3]
    %873 = vmatprep.subr.mxu0 0.0
    %874 = vmatpush1.msra.mxu0 %v25
    %875 = vmatprep.subr.mxu0 0.0
    %876 = vmatpush1.msra.mxu0 %v26
    %877 = vmatprep.subr.mxu0 0.0
    %878 = vmatpush1.msra.mxu0 %v27
    %879 = vmatprep.subr.mxu0 0.0
    %880 = vmatpush1.msra.mxu0 %v28
    %881 = vmatprep.subr.mxu0 0.0
    %882 = vmatpush1.msra.mxu0 0.0
    %883 = vmatprep.subr.mxu0 0.0
    %884 = vmatpush1.msra.mxu0 0.0
    %885 = vmatprep.subr.mxu0 0.0
    %886 = vmatpush1.msra.mxu0 0.0
    %887 = vmatprep.subr.mxu0 0.0
    %888 = vmatpush1.msra.mxu0 0.0
    %889 = vmatprep.subr.mxu0 0.0
    %890 = vmatpush1.msra.mxu0 0.0
    %891 = vmatprep.subr.mxu0 0.0
    %892 = vmatpush1.msra.mxu0 0.0
    %893 = vmatprep.subr.mxu0 0.0
    %894 = vmatpush1.msra.mxu0 0.0
    %895 = vmatprep.subr.mxu0 0.0
    %896 = vmatpush1.msra.mxu0 0.0
    %897 = vmatprep.subr.mxu0 0.0
    %898 = vmatpush1.msra.mxu0 0.0
    %899 = vmatprep.subr.mxu0 0.0
    %900 = vmatpush1.msra.mxu0 0.0
    %901 = vmatprep.subr.mxu0 0.0
    %902 = vmatpush1.msra.mxu0 0.0
    %903 = vmatprep.subr.mxu0 0.0
    %904 = vmatpush1.msra.mxu0 0.0
    %905 = vmatprep.subr.mxu0 0.0
    %906 = vmatpush1.msra.mxu0 0.0
    %907 = vmatprep.subr.mxu0 0.0
    %908 = vmatpush1.msra.mxu0 0.0
    %909 = vmatprep.subr.mxu0 0.0
    %910 = vmatpush1.msra.mxu0 0.0
    %911 = vmatprep.subr.mxu0 0.0
    %912 = vmatpush1.msra.mxu0 0.0
    %913 = vmatprep.subr.mxu0 0.0
    %914 = vmatpush1.msra.mxu0 0.0
    %915 = vmatprep.subr.mxu0 0.0
    %916 = vmatpush1.msra.mxu0 0.0
    %917 = vmatprep.subr.mxu0 0.0
    %918 = vmatpush1.msra.mxu0 0.0
    %919 = vmatprep.subr.mxu0 0.0
    %920 = vmatpush1.msra.mxu0 0.0
    %921 = vmatprep.subr.mxu0 0.0
    %922 = vmatpush1.msra.mxu0 0.0
    %923 = vmatprep.subr.mxu0 0.0
    %924 = vmatpush1.msra.mxu0 0.0
    %925 = vmatprep.subr.mxu0 0.0
    %926 = vmatpush1.msra.mxu0 0.0
    %927 = vmatprep.subr.mxu0 0.0
    %928 = vmatpush1.msra.mxu0 0.0
    %929 = vmatprep.subr.mxu0 0.0
    %930 = vmatpush1.msra.mxu0 0.0
    %931 = vmatprep.subr.mxu0 0.0
    %932 = vmatpush1.msra.mxu0 0.0
    %933 = vmatprep.subr.mxu0 0.0
    %934 = vmatpush1.msra.mxu0 0.0
    %935 = vmatprep.subr.mxu0 0.0
    %936 = vmatpush1.msra.mxu0 0.0
    %937 = vmatprep.mubr.f32.mxu0 0.0
    %938 = vmatmul.mubr.f32.gmra.mrb[0].mxu0 %v696
    %v939 = vpop.f32.mrb[0].mxu0
    %v940 = vadd.f32 0.0, %v939
    %v941 = vpop.f32.mrb[0].mxu0
    %942 = vdwg.mxu0
    %v943 = vadd.f32 %v872, %v940
    %v944 = vxor.u32 %v943, 2147483648
    %v945 = vmul.f32 %v944, 1.442695
    %v946 = vpow.pop %v945
    %v947 = vadd.f32 %v946, 1.0
    %v948 = vrcp.pop %v947
    %v949 = vmul.f32 1.0, %v948
    %v950 = vtanh.pop %v943
    %v951 = vmul.f32 %v949, %v686
    %953 = vrot.lane.b32.xlu0 %v950, 64
    %v954 = vpop.permute.xlu0 %953
    %v956 = vmul.f32 %v949, %v954
    %958 = vrot.lane.b32.xlu0 %v956, 32
    %v959 = vpop.permute.xlu0 %958
    %v961 = vadd.f32 %v951, %v959
    %v962 = vtanh.pop %v961
    %964 = vrot.lane.b32.xlu0 %v962, 64
    %v965 = vpop.permute.xlu0 %964
    %v967 = vmul.f32 %v949, %v965
    %969 = vrot.lane.b32.xlu0 %v967, 32
    %v970 = vpop.permute.xlu0 %969
    %v971 = vsel %vm43, %v970, 0
    %973 = vmatprep.subr.mxu0 0.0
    %974 = vmatpush1.msra.mxu0 %v29
    %975 = vmatprep.subr.mxu0 0.0
    %976 = vmatpush1.msra.mxu0 %v30
    %977 = vmatprep.subr.mxu0 0.0
    %978 = vmatpush1.msra.mxu0 %v31
    %979 = vmatprep.subr.mxu0 0.0
    %980 = vmatpush1.msra.mxu0 %v32
    %981 = vmatprep.subr.mxu0 0.0
    %982 = vmatpush1.msra.mxu0 0.0
    %983 = vmatprep.subr.mxu0 0.0
    %984 = vmatpush1.msra.mxu0 0.0
    %985 = vmatprep.subr.mxu0 0.0
    %986 = vmatpush1.msra.mxu0 0.0
    %987 = vmatprep.subr.mxu0 0.0
    %988 = vmatpush1.msra.mxu0 0.0
    %989 = vmatprep.subr.mxu0 0.0
    %990 = vmatpush1.msra.mxu0 0.0
    %991 = vmatprep.subr.mxu0 0.0
    %992 = vmatpush1.msra.mxu0 0.0
    %993 = vmatprep.subr.mxu0 0.0
    %994 = vmatpush1.msra.mxu0 0.0
    %995 = vmatprep.subr.mxu0 0.0
    %996 = vmatpush1.msra.mxu0 0.0
    %997 = vmatprep.subr.mxu0 0.0
    %998 = vmatpush1.msra.mxu0 0.0
    %999 = vmatprep.subr.mxu0 0.0
    %1000 = vmatpush1.msra.mxu0 0.0
    %1001 = vmatprep.subr.mxu0 0.0
    %1002 = vmatpush1.msra.mxu0 0.0
    %1003 = vmatprep.subr.mxu0 0.0
    %1004 = vmatpush1.msra.mxu0 0.0
    %1005 = vmatprep.subr.mxu0 0.0
    %1006 = vmatpush1.msra.mxu0 0.0
    %1007 = vmatprep.subr.mxu0 0.0
    %1008 = vmatpush1.msra.mxu0 0.0
    %1009 = vmatprep.subr.mxu0 0.0
    %1010 = vmatpush1.msra.mxu0 0.0
    %1011 = vmatprep.subr.mxu0 0.0
    %1012 = vmatpush1.msra.mxu0 0.0
    %1013 = vmatprep.subr.mxu0 0.0
    %1014 = vmatpush1.msra.mxu0 0.0
    %1015 = vmatprep.subr.mxu0 0.0
    %1016 = vmatpush1.msra.mxu0 0.0
    %1017 = vmatprep.subr.mxu0 0.0
    %1018 = vmatpush1.msra.mxu0 0.0
    %1019 = vmatprep.subr.mxu0 0.0
    %1020 = vmatpush1.msra.mxu0 0.0
    %1021 = vmatprep.subr.mxu0 0.0
    %1022 = vmatpush1.msra.mxu0 0.0
    %1023 = vmatprep.subr.mxu0 0.0
    %1024 = vmatpush1.msra.mxu0 0.0
    %1025 = vmatprep.subr.mxu0 0.0
    %1026 = vmatpush1.msra.mxu0 0.0
    %1027 = vmatprep.subr.mxu0 0.0
    %1028 = vmatpush1.msra.mxu0 0.0
    %1029 = vmatprep.subr.mxu0 0.0
    %1030 = vmatpush1.msra.mxu0 0.0
    %1031 = vmatprep.subr.mxu0 0.0
    %1032 = vmatpush1.msra.mxu0 0.0
    %1033 = vmatprep.subr.mxu0 0.0
    %1034 = vmatpush1.msra.mxu0 0.0
    %1035 = vmatprep.subr.mxu0 0.0
    %1036 = vmatpush1.msra.mxu0 0.0
    %1037 = vmatprep.mubr.f32.mxu0 0.0
    %1038 = vmatmul.mubr.f32.gmra.mrb[0].mxu0 %v971
    %v1039 = vpop.f32.mrb[0].mxu0
    %v1040 = vadd.f32 %v40, %v1039
    %v1041 = vpop.f32.mrb[0].mxu0
    %1042 = vdwg.mxu0
    %v1043 = vsel %vm217, %v867, 0
    %1045 = vmatprep.subr.mxu0 0.0
    %1046 = vmatpush1.msra.mxu0 %v33
    %1047 = vmatprep.subr.mxu0 0.0
    %1048 = vmatpush1.msra.mxu0 %v34
    %1049 = vmatprep.subr.mxu0 0.0
    %1050 = vmatpush1.msra.mxu0 0.0
    %1051 = vmatprep.subr.mxu0 0.0
    %1052 = vmatpush1.msra.mxu0 0.0
    %1053 = vmatprep.subr.mxu0 0.0
    %1054 = vmatpush1.msra.mxu0 0.0
    %1055 = vmatprep.subr.mxu0 0.0
    %1056 = vmatpush1.msra.mxu0 0.0
    %1057 = vmatprep.subr.mxu0 0.0
    %1058 = vmatpush1.msra.mxu0 0.0
    %1059 = vmatprep.subr.mxu0 0.0
    %1060 = vmatpush1.msra.mxu0 0.0
    %1061 = vmatprep.subr.mxu0 0.0
    %1062 = vmatpush1.msra.mxu0 0.0
    %1063 = vmatprep.subr.mxu0 0.0
    %1064 = vmatpush1.msra.mxu0 0.0
    %1065 = vmatprep.subr.mxu0 0.0
    %1066 = vmatpush1.msra.mxu0 0.0
    %1067 = vmatprep.subr.mxu0 0.0
    %1068 = vmatpush1.msra.mxu0 0.0
    %1069 = vmatprep.subr.mxu0 0.0
    %1070 = vmatpush1.msra.mxu0 0.0
    %1071 = vmatprep.subr.mxu0 0.0
    %1072 = vmatpush1.msra.mxu0 0.0
    %1073 = vmatprep.subr.mxu0 0.0
    %1074 = vmatpush1.msra.mxu0 0.0
    %1075 = vmatprep.subr.mxu0 0.0
    %1076 = vmatpush1.msra.mxu0 0.0
    %1077 = vmatprep.subr.mxu0 0.0
    %1078 = vmatpush1.msra.mxu0 0.0
    %1079 = vmatprep.subr.mxu0 0.0
    %1080 = vmatpush1.msra.mxu0 0.0
    %1081 = vmatprep.subr.mxu0 0.0
    %1082 = vmatpush1.msra.mxu0 0.0
    %1083 = vmatprep.subr.mxu0 0.0
    %1084 = vmatpush1.msra.mxu0 0.0
    %1085 = vmatprep.subr.mxu0 0.0
    %1086 = vmatpush1.msra.mxu0 0.0
    %1087 = vmatprep.subr.mxu0 0.0
    %1088 = vmatpush1.msra.mxu0 0.0
    %1089 = vmatprep.subr.mxu0 0.0
    %1090 = vmatpush1.msra.mxu0 0.0
    %1091 = vmatprep.subr.mxu0 0.0
    %1092 = vmatpush1.msra.mxu0 0.0
    %1093 = vmatprep.subr.mxu0 0.0
    %1094 = vmatpush1.msra.mxu0 0.0
    %1095 = vmatprep.subr.mxu0 0.0
    %1096 = vmatpush1.msra.mxu0 0.0
    %1097 = vmatprep.subr.mxu0 0.0
    %1098 = vmatpush1.msra.mxu0 0.0
    %1099 = vmatprep.subr.mxu0 0.0
    %1100 = vmatpush1.msra.mxu0 0.0
    %1101 = vmatprep.subr.mxu0 0.0
    %1102 = vmatpush1.msra.mxu0 0.0
    %1103 = vmatprep.subr.mxu0 0.0
    %1104 = vmatpush1.msra.mxu0 0.0
    %1105 = vmatprep.subr.mxu0 0.0
    %1106 = vmatpush1.msra.mxu0 0.0
    %1107 = vmatprep.subr.mxu0 0.0
    %1108 = vmatpush1.msra.mxu0 0.0
    %1109 = vmatprep.mubr.f32.mxu0 0.0
    %1110 = vmatmul.mubr.f32.gmra.mrb[0].mxu0 %v1043
    %v1111 = vpop.f32.mrb[0].mxu0
    %v1112 = vadd.f32 0.0, %v1111
    %v1113 = vpop.f32.mrb[0].mxu0
    %1114 = vdwg.mxu0
    %v1115 = vadd.f32 %v1040, %v1112
    %v1116 = vxor.u32 %v1115, 2147483648
    %v1117 = vmul.f32 %v1116, 1.442695
    %v1118 = vpow.pop %v1117
    %v1119 = vadd.f32 %v1118, 1.0
    %v1120 = vrcp.pop %v1119
    %v1121 = vmul.f32 1.0, %v1120
    %v1122 = vtanh.pop %v1115
    %v1123 = vmul.f32 %v1121, %v858
    %1125 = vrot.lane.b32.xlu0 %v1122, 96
    %v1126 = vpop.permute.xlu0 %1125
    %v1128 = vmul.f32 %v1121, %v1126
    %1130 = vrot.lane.b32.xlu0 %v1128, 16
    %v1131 = vpop.permute.xlu0 %1130
    %v1133 = vadd.f32 %v1123, %v1131
    %v1134 = vtanh.pop %v1133
    %1136 = vrot.lane.b32.xlu0 %v1134, 32
    %v1137 = vpop.permute.xlu0 %1136
    %v1139 = vmul.f32 %v1121, %v1137
    %1141 = vrot.lane.b32.xlu0 %v1139, 80
    %v1142 = vpop.permute.xlu0 %1141
    %s1144 = scalar_lea.vmem %s5, 6
    %1145 = vst.msk [vmem:[%s1144] sm:$0x3] %vm319, %v1142
    %s1146 = scalar_lea.vmem %s0, 8
    %v1147 = vld [vmem:[%s1146] sm:$0x3]
    %1148 = vmatprep.subr.mxu0 0.0
    %1149 = vmatpush1.msra.mxu0 %v25
    %1150 = vmatprep.subr.mxu0 0.0
    %1151 = vmatpush1.msra.mxu0 %v26
    %1152 = vmatprep.subr.mxu0 0.0
    %1153 = vmatpush1.msra.mxu0 %v27
    %1154 = vmatprep.subr.mxu0 0.0
    %1155 = vmatpush1.msra.mxu0 %v28
    %1156 = vmatprep.subr.mxu0 0.0
    %1157 = vmatpush1.msra.mxu0 0.0
    %1158 = vmatprep.subr.mxu0 0.0
    %1159 = vmatpush1.msra.mxu0 0.0
    %1160 = vmatprep.subr.mxu0 0.0
    %1161 = vmatpush1.msra.mxu0 0.0
    %1162 = vmatprep.subr.mxu0 0.0
    %1163 = vmatpush1.msra.mxu0 0.0
    %1164 = vmatprep.subr.mxu0 0.0
    %1165 = vmatpush1.msra.mxu0 0.0
    %1166 = vmatprep.subr.mxu0 0.0
    %1167 = vmatpush1.msra.mxu0 0.0
    %1168 = vmatprep.subr.mxu0 0.0
    %1169 = vmatpush1.msra.mxu0 0.0
    %1170 = vmatprep.subr.mxu0 0.0
    %1171 = vmatpush1.msra.mxu0 0.0
    %1172 = vmatprep.subr.mxu0 0.0
    %1173 = vmatpush1.msra.mxu0 0.0
    %1174 = vmatprep.subr.mxu0 0.0
    %1175 = vmatpush1.msra.mxu0 0.0
    %1176 = vmatprep.subr.mxu0 0.0
    %1177 = vmatpush1.msra.mxu0 0.0
    %1178 = vmatprep.subr.mxu0 0.0
    %1179 = vmatpush1.msra.mxu0 0.0
    %1180 = vmatprep.subr.mxu0 0.0
    %1181 = vmatpush1.msra.mxu0 0.0
    %1182 = vmatprep.subr.mxu0 0.0
    %1183 = vmatpush1.msra.mxu0 0.0
    %1184 = vmatprep.subr.mxu0 0.0
    %1185 = vmatpush1.msra.mxu0 0.0
    %1186 = vmatprep.subr.mxu0 0.0
    %1187 = vmatpush1.msra.mxu0 0.0
    %1188 = vmatprep.subr.mxu0 0.0
    %1189 = vmatpush1.msra.mxu0 0.0
    %1190 = vmatprep.subr.mxu0 0.0
    %1191 = vmatpush1.msra.mxu0 0.0
    %1192 = vmatprep.subr.mxu0 0.0
    %1193 = vmatpush1.msra.mxu0 0.0
    %1194 = vmatprep.subr.mxu0 0.0
    %1195 = vmatpush1.msra.mxu0 0.0
    %1196 = vmatprep.subr.mxu0 0.0
    %1197 = vmatpush1.msra.mxu0 0.0
    %1198 = vmatprep.subr.mxu0 0.0
    %1199 = vmatpush1.msra.mxu0 0.0
    %1200 = vmatprep.subr.mxu0 0.0
    %1201 = vmatpush1.msra.mxu0 0.0
    %1202 = vmatprep.subr.mxu0 0.0
    %1203 = vmatpush1.msra.mxu0 0.0
    %1204 = vmatprep.subr.mxu0 0.0
    %1205 = vmatpush1.msra.mxu0 0.0
    %1206 = vmatprep.subr.mxu0 0.0
    %1207 = vmatpush1.msra.mxu0 0.0
    %1208 = vmatprep.subr.mxu0 0.0
    %1209 = vmatpush1.msra.mxu0 0.0
    %1210 = vmatprep.subr.mxu0 0.0
    %1211 = vmatpush1.msra.mxu0 0.0
    %1212 = vmatprep.mubr.f32.mxu0 0.0
    %1213 = vmatmul.mubr.f32.gmra.mrb[0].mxu0 %v971
    %v1214 = vpop.f32.mrb[0].mxu0
    %v1215 = vadd.f32 0.0, %v1214
    %v1216 = vpop.f32.mrb[0].mxu0
    %1217 = vdwg.mxu0
    %v1218 = vadd.f32 %v1147, %v1215
    %v1219 = vxor.u32 %v1218, 2147483648
    %v1220 = vmul.f32 %v1219, 1.442695
    %v1221 = vpow.pop %v1220
    %v1222 = vadd.f32 %v1221, 1.0
    %v1223 = vrcp.pop %v1222
    %v1224 = vmul.f32 1.0, %v1223
    %v1225 = vtanh.pop %v1218
    %v1226 = vmul.f32 %v1224, %v961
    %1228 = vrot.lane.b32.xlu0 %v1225, 64
    %v1229 = vpop.permute.xlu0 %1228
    %v1231 = vmul.f32 %v1224, %v1229
    %1233 = vrot.lane.b32.xlu0 %v1231, 32
    %v1234 = vpop.permute.xlu0 %1233
    %v1236 = vadd.f32 %v1226, %v1234
    %v1237 = vtanh.pop %v1236
    %1239 = vrot.lane.b32.xlu0 %v1237, 64
    %v1240 = vpop.permute.xlu0 %1239
    %v1242 = vmul.f32 %v1224, %v1240
    %1244 = vrot.lane.b32.xlu0 %v1242, 32
    %v1245 = vpop.permute.xlu0 %1244
    %v1246 = vsel %vm43, %v1245, 0
    %1248 = vmatprep.subr.mxu0 0.0
    %1249 = vmatpush1.msra.mxu0 %v29
    %1250 = vmatprep.subr.mxu0 0.0
    %1251 = vmatpush1.msra.mxu0 %v30
    %1252 = vmatprep.subr.mxu0 0.0
    %1253 = vmatpush1.msra.mxu0 %v31
    %1254 = vmatprep.subr.mxu0 0.0
    %1255 = vmatpush1.msra.mxu0 %v32
    %1256 = vmatprep.subr.mxu0 0.0
    %1257 = vmatpush1.msra.mxu0 0.0
    %1258 = vmatprep.subr.mxu0 0.0
    %1259 = vmatpush1.msra.mxu0 0.0
    %1260 = vmatprep.subr.mxu0 0.0
    %1261 = vmatpush1.msra.mxu0 0.0
    %1262 = vmatprep.subr.mxu0 0.0
    %1263 = vmatpush1.msra.mxu0 0.0
    %1264 = vmatprep.subr.mxu0 0.0
    %1265 = vmatpush1.msra.mxu0 0.0
    %1266 = vmatprep.subr.mxu0 0.0
    %1267 = vmatpush1.msra.mxu0 0.0
    %1268 = vmatprep.subr.mxu0 0.0
    %1269 = vmatpush1.msra.mxu0 0.0
    %1270 = vmatprep.subr.mxu0 0.0
    %1271 = vmatpush1.msra.mxu0 0.0
    %1272 = vmatprep.subr.mxu0 0.0
    %1273 = vmatpush1.msra.mxu0 0.0
    %1274 = vmatprep.subr.mxu0 0.0
    %1275 = vmatpush1.msra.mxu0 0.0
    %1276 = vmatprep.subr.mxu0 0.0
    %1277 = vmatpush1.msra.mxu0 0.0
    %1278 = vmatprep.subr.mxu0 0.0
    %1279 = vmatpush1.msra.mxu0 0.0
    %1280 = vmatprep.subr.mxu0 0.0
    %1281 = vmatpush1.msra.mxu0 0.0
    %1282 = vmatprep.subr.mxu0 0.0
    %1283 = vmatpush1.msra.mxu0 0.0
    %1284 = vmatprep.subr.mxu0 0.0
    %1285 = vmatpush1.msra.mxu0 0.0
    %1286 = vmatprep.subr.mxu0 0.0
    %1287 = vmatpush1.msra.mxu0 0.0
    %1288 = vmatprep.subr.mxu0 0.0
    %1289 = vmatpush1.msra.mxu0 0.0
    %1290 = vmatprep.subr.mxu0 0.0
    %1291 = vmatpush1.msra.mxu0 0.0
    %1292 = vmatprep.subr.mxu0 0.0
    %1293 = vmatpush1.msra.mxu0 0.0
    %1294 = vmatprep.subr.mxu0 0.0
    %1295 = vmatpush1.msra.mxu0 0.0
    %1296 = vmatprep.subr.mxu0 0.0
    %1297 = vmatpush1.msra.mxu0 0.0
    %1298 = vmatprep.subr.mxu0 0.0
    %1299 = vmatpush1.msra.mxu0 0.0
    %1300 = vmatprep.subr.mxu0 0.0
    %1301 = vmatpush1.msra.mxu0 0.0
    %1302 = vmatprep.subr.mxu0 0.0
    %1303 = vmatpush1.msra.mxu0 0.0
    %1304 = vmatprep.subr.mxu0 0.0
    %1305 = vmatpush1.msra.mxu0 0.0
    %1306 = vmatprep.subr.mxu0 0.0
    %1307 = vmatpush1.msra.mxu0 0.0
    %1308 = vmatprep.subr.mxu0 0.0
    %1309 = vmatpush1.msra.mxu0 0.0
    %1310 = vmatprep.subr.mxu0 0.0
    %1311 = vmatpush1.msra.mxu0 0.0
    %1312 = vmatprep.mubr.f32.mxu0 0.0
    %1313 = vmatmul.mubr.f32.gmra.mrb[0].mxu0 %v1246
    %v1314 = vpop.f32.mrb[0].mxu0
    %v1315 = vadd.f32 %v40, %v1314
    %v1316 = vpop.f32.mrb[0].mxu0
    %1317 = vdwg.mxu0
    %v1318 = vsel %vm217, %v1142, 0
    %1320 = vmatprep.subr.mxu0 0.0
    %1321 = vmatpush1.msra.mxu0 %v33
    %1322 = vmatprep.subr.mxu0 0.0
    %1323 = vmatpush1.msra.mxu0 %v34
    %1324 = vmatprep.subr.mxu0 0.0
    %1325 = vmatpush1.msra.mxu0 0.0
    %1326 = vmatprep.subr.mxu0 0.0
    %1327 = vmatpush1.msra.mxu0 0.0
    %1328 = vmatprep.subr.mxu0 0.0
    %1329 = vmatpush1.msra.mxu0 0.0
    %1330 = vmatprep.subr.mxu0 0.0
    %1331 = vmatpush1.msra.mxu0 0.0
    %1332 = vmatprep.subr.mxu0 0.0
    %1333 = vmatpush1.msra.mxu0 0.0
    %1334 = vmatprep.subr.mxu0 0.0
    %1335 = vmatpush1.msra.mxu0 0.0
    %1336 = vmatprep.subr.mxu0 0.0
    %1337 = vmatpush1.msra.mxu0 0.0
    %1338 = vmatprep.subr.mxu0 0.0
    %1339 = vmatpush1.msra.mxu0 0.0
    %1340 = vmatprep.subr.mxu0 0.0
    %1341 = vmatpush1.msra.mxu0 0.0
    %1342 = vmatprep.subr.mxu0 0.0
    %1343 = vmatpush1.msra.mxu0 0.0
    %1344 = vmatprep.subr.mxu0 0.0
    %1345 = vmatpush1.msra.mxu0 0.0
    %1346 = vmatprep.subr.mxu0 0.0
    %1347 = vmatpush1.msra.mxu0 0.0
    %1348 = vmatprep.subr.mxu0 0.0
    %1349 = vmatpush1.msra.mxu0 0.0
    %1350 = vmatprep.subr.mxu0 0.0
    %1351 = vmatpush1.msra.mxu0 0.0
    %1352 = vmatprep.subr.mxu0 0.0
    %1353 = vmatpush1.msra.mxu0 0.0
    %1354 = vmatprep.subr.mxu0 0.0
    %1355 = vmatpush1.msra.mxu0 0.0
    %1356 = vmatprep.subr.mxu0 0.0
    %1357 = vmatpush1.msra.mxu0 0.0
    %1358 = vmatprep.subr.mxu0 0.0
    %1359 = vmatpush1.msra.mxu0 0.0
    %1360 = vmatprep.subr.mxu0 0.0
    %1361 = vmatpush1.msra.mxu0 0.0
    %1362 = vmatprep.subr.mxu0 0.0
    %1363 = vmatpush1.msra.mxu0 0.0
    %1364 = vmatprep.subr.mxu0 0.0
    %1365 = vmatpush1.msra.mxu0 0.0
    %1366 = vmatprep.subr.mxu0 0.0
    %1367 = vmatpush1.msra.mxu0 0.0
    %1368 = vmatprep.subr.mxu0 0.0
    %1369 = vmatpush1.msra.mxu0 0.0
    %1370 = vmatprep.subr.mxu0 0.0
    %1371 = vmatpush1.msra.mxu0 0.0
    %1372 = vmatprep.subr.mxu0 0.0
    %1373 = vmatpush1.msra.mxu0 0.0
    %1374 = vmatprep.subr.mxu0 0.0
    %1375 = vmatpush1.msra.mxu0 0.0
    %1376 = vmatprep.subr.mxu0 0.0
    %1377 = vmatpush1.msra.mxu0 0.0
    %1378 = vmatprep.subr.mxu0 0.0
    %1379 = vmatpush1.msra.mxu0 0.0
    %1380 = vmatprep.subr.mxu0 0.0
    %1381 = vmatpush1.msra.mxu0 0.0
    %1382 = vmatprep.subr.mxu0 0.0
    %1383 = vmatpush1.msra.mxu0 0.0
    %1384 = vmatprep.mubr.f32.mxu0 0.0
    %1385 = vmatmul.mubr.f32.gmra.mrb[0].mxu0 %v1318
    %v1386 = vpop.f32.mrb[0].mxu0
    %v1387 = vadd.f32 0.0, %v1386
    %v1388 = vpop.f32.mrb[0].mxu0
    %1389 = vdwg.mxu0
    %v1390 = vadd.f32 %v1315, %v1387
    %v1391 = vxor.u32 %v1390, 2147483648
    %v1392 = vmul.f32 %v1391, 1.442695
    %v1393 = vpow.pop %v1392
    %v1394 = vadd.f32 %v1393, 1.0
    %v1395 = vrcp.pop %v1394
    %v1396 = vmul.f32 1.0, %v1395
    %v1397 = vtanh.pop %v1390
    %v1398 = vmul.f32 %v1396, %v1133
    %1400 = vrot.lane.b32.xlu0 %v1397, 96
    %v1401 = vpop.permute.xlu0 %1400
    %v1403 = vmul.f32 %v1396, %v1401
    %1405 = vrot.lane.b32.xlu0 %v1403, 16
    %v1406 = vpop.permute.xlu0 %1405
    %v1408 = vadd.f32 %v1398, %v1406
    %v1409 = vtanh.pop %v1408
    %1411 = vrot.lane.b32.xlu0 %v1409, 32
    %v1412 = vpop.permute.xlu0 %1411
    %v1414 = vmul.f32 %v1396, %v1412
    %1416 = vrot.lane.b32.xlu0 %v1414, 80
    %v1417 = vpop.permute.xlu0 %1416
    %s1419 = scalar_lea.vmem %s5, 8
    %1420 = vst.msk [vmem:[%s1419] sm:$0x3] %vm319, %v1417
    %s1421 = scalar_lea.vmem %s0, 10
    %v1422 = vld [vmem:[%s1421] sm:$0x3]
    %1423 = vmatprep.subr.mxu0 0.0
    %1424 = vmatpush1.msra.mxu0 %v25
    %1425 = vmatprep.subr.mxu0 0.0
    %1426 = vmatpush1.msra.mxu0 %v26
    %1427 = vmatprep.subr.mxu0 0.0
    %1428 = vmatpush1.msra.mxu0 %v27
    %1429 = vmatprep.subr.mxu0 0.0
    %1430 = vmatpush1.msra.mxu0 %v28
    %1431 = vmatprep.subr.mxu0 0.0
    %1432 = vmatpush1.msra.mxu0 0.0
    %1433 = vmatprep.subr.mxu0 0.0
    %1434 = vmatpush1.msra.mxu0 0.0
    %1435 = vmatprep.subr.mxu0 0.0
    %1436 = vmatpush1.msra.mxu0 0.0
    %1437 = vmatprep.subr.mxu0 0.0
    %1438 = vmatpush1.msra.mxu0 0.0
    %1439 = vmatprep.subr.mxu0 0.0
    %1440 = vmatpush1.msra.mxu0 0.0
    %1441 = vmatprep.subr.mxu0 0.0
    %1442 = vmatpush1.msra.mxu0 0.0
    %1443 = vmatprep.subr.mxu0 0.0
    %1444 = vmatpush1.msra.mxu0 0.0
    %1445 = vmatprep.subr.mxu0 0.0
    %1446 = vmatpush1.msra.mxu0 0.0
    %1447 = vmatprep.subr.mxu0 0.0
    %1448 = vmatpush1.msra.mxu0 0.0
    %1449 = vmatprep.subr.mxu0 0.0
    %1450 = vmatpush1.msra.mxu0 0.0
    %1451 = vmatprep.subr.mxu0 0.0
    %1452 = vmatpush1.msra.mxu0 0.0
    %1453 = vmatprep.subr.mxu0 0.0
    %1454 = vmatpush1.msra.mxu0 0.0
    %1455 = vmatprep.subr.mxu0 0.0
    %1456 = vmatpush1.msra.mxu0 0.0
    %1457 = vmatprep.subr.mxu0 0.0
    %1458 = vmatpush1.msra.mxu0 0.0
    %1459 = vmatprep.subr.mxu0 0.0
    %1460 = vmatpush1.msra.mxu0 0.0
    %1461 = vmatprep.subr.mxu0 0.0
    %1462 = vmatpush1.msra.mxu0 0.0
    %1463 = vmatprep.subr.mxu0 0.0
    %1464 = vmatpush1.msra.mxu0 0.0
    %1465 = vmatprep.subr.mxu0 0.0
    %1466 = vmatpush1.msra.mxu0 0.0
    %1467 = vmatprep.subr.mxu0 0.0
    %1468 = vmatpush1.msra.mxu0 0.0
    %1469 = vmatprep.subr.mxu0 0.0
    %1470 = vmatpush1.msra.mxu0 0.0
    %1471 = vmatprep.subr.mxu0 0.0
    %1472 = vmatpush1.msra.mxu0 0.0
    %1473 = vmatprep.subr.mxu0 0.0
    %1474 = vmatpush1.msra.mxu0 0.0
    %1475 = vmatprep.subr.mxu0 0.0
    %1476 = vmatpush1.msra.mxu0 0.0
    %1477 = vmatprep.subr.mxu0 0.0
    %1478 = vmatpush1.msra.mxu0 0.0
    %1479 = vmatprep.subr.mxu0 0.0
    %1480 = vmatpush1.msra.mxu0 0.0
    %1481 = vmatprep.subr.mxu0 0.0
    %1482 = vmatpush1.msra.mxu0 0.0
    %1483 = vmatprep.subr.mxu0 0.0
    %1484 = vmatpush1.msra.mxu0 0.0
    %1485 = vmatprep.subr.mxu0 0.0
    %1486 = vmatpush1.msra.mxu0 0.0
    %1487 = vmatprep.mubr.f32.mxu0 0.0
    %1488 = vmatmul.mubr.f32.gmra.mrb[0].mxu0 %v1246
    %v1489 = vpop.f32.mrb[0].mxu0
    %v1490 = vadd.f32 0.0, %v1489
    %v1491 = vpop.f32.mrb[0].mxu0
    %1492 = vdwg.mxu0
    %v1493 = vadd.f32 %v1422, %v1490
    %v1494 = vxor.u32 %v1493, 2147483648
    %v1495 = vmul.f32 %v1494, 1.442695
    %v1496 = vpow.pop %v1495
    %v1497 = vadd.f32 %v1496, 1.0
    %v1498 = vrcp.pop %v1497
    %v1499 = vmul.f32 1.0, %v1498
    %v1500 = vtanh.pop %v1493
    %v1501 = vmul.f32 %v1499, %v1236
    %1503 = vrot.lane.b32.xlu0 %v1500, 64
    %v1504 = vpop.permute.xlu0 %1503
    %v1506 = vmul.f32 %v1499, %v1504
    %1508 = vrot.lane.b32.xlu0 %v1506, 32
    %v1509 = vpop.permute.xlu0 %1508
    %v1511 = vadd.f32 %v1501, %v1509
    %v1512 = vtanh.pop %v1511
    %1514 = vrot.lane.b32.xlu0 %v1512, 64
    %v1515 = vpop.permute.xlu0 %1514
    %v1517 = vmul.f32 %v1499, %v1515
    %1519 = vrot.lane.b32.xlu0 %v1517, 32
    %v1520 = vpop.permute.xlu0 %1519
    %v1521 = vsel %vm43, %v1520, 0
    %1523 = vmatprep.subr.mxu0 0.0
    %1524 = vmatpush1.msra.mxu0 %v29
    %1525 = vmatprep.subr.mxu0 0.0
    %1526 = vmatpush1.msra.mxu0 %v30
    %1527 = vmatprep.subr.mxu0 0.0
    %1528 = vmatpush1.msra.mxu0 %v31
    %1529 = vmatprep.subr.mxu0 0.0
    %1530 = vmatpush1.msra.mxu0 %v32
    %1531 = vmatprep.subr.mxu0 0.0
    %1532 = vmatpush1.msra.mxu0 0.0
    %1533 = vmatprep.subr.mxu0 0.0
    %1534 = vmatpush1.msra.mxu0 0.0
    %1535 = vmatprep.subr.mxu0 0.0
    %1536 = vmatpush1.msra.mxu0 0.0
    %1537 = vmatprep.subr.mxu0 0.0
    %1538 = vmatpush1.msra.mxu0 0.0
    %1539 = vmatprep.subr.mxu0 0.0
    %1540 = vmatpush1.msra.mxu0 0.0
    %1541 = vmatprep.subr.mxu0 0.0
    %1542 = vmatpush1.msra.mxu0 0.0
    %1543 = vmatprep.subr.mxu0 0.0
    %1544 = vmatpush1.msra.mxu0 0.0
    %1545 = vmatprep.subr.mxu0 0.0
    %1546 = vmatpush1.msra.mxu0 0.0
    %1547 = vmatprep.subr.mxu0 0.0
    %1548 = vmatpush1.msra.mxu0 0.0
    %1549 = vmatprep.subr.mxu0 0.0
    %1550 = vmatpush1.msra.mxu0 0.0
    %1551 = vmatprep.subr.mxu0 0.0
    %1552 = vmatpush1.msra.mxu0 0.0
    %1553 = vmatprep.subr.mxu0 0.0
    %1554 = vmatpush1.msra.mxu0 0.0
    %1555 = vmatprep.subr.mxu0 0.0
    %1556 = vmatpush1.msra.mxu0 0.0
    %1557 = vmatprep.subr.mxu0 0.0
    %1558 = vmatpush1.msra.mxu0 0.0
    %1559 = vmatprep.subr.mxu0 0.0
    %1560 = vmatpush1.msra.mxu0 0.0
    %1561 = vmatprep.subr.mxu0 0.0
    %1562 = vmatpush1.msra.mxu0 0.0
    %1563 = vmatprep.subr.mxu0 0.0
    %1564 = vmatpush1.msra.mxu0 0.0
    %1565 = vmatprep.subr.mxu0 0.0
    %1566 = vmatpush1.msra.mxu0 0.0
    %1567 = vmatprep.subr.mxu0 0.0
    %1568 = vmatpush1.msra.mxu0 0.0
    %1569 = vmatprep.subr.mxu0 0.0
    %1570 = vmatpush1.msra.mxu0 0.0
    %1571 = vmatprep.subr.mxu0 0.0
    %1572 = vmatpush1.msra.mxu0 0.0
    %1573 = vmatprep.subr.mxu0 0.0
    %1574 = vmatpush1.msra.mxu0 0.0
    %1575 = vmatprep.subr.mxu0 0.0
    %1576 = vmatpush1.msra.mxu0 0.0
    %1577 = vmatprep.subr.mxu0 0.0
    %1578 = vmatpush1.msra.mxu0 0.0
    %1579 = vmatprep.subr.mxu0 0.0
    %1580 = vmatpush1.msra.mxu0 0.0
    %1581 = vmatprep.subr.mxu0 0.0
    %1582 = vmatpush1.msra.mxu0 0.0
    %1583 = vmatprep.subr.mxu0 0.0
    %1584 = vmatpush1.msra.mxu0 0.0
    %1585 = vmatprep.subr.mxu0 0.0
    %1586 = vmatpush1.msra.mxu0 0.0
    %1587 = vmatprep.mubr.f32.mxu0 0.0
    %1588 = vmatmul.mubr.f32.gmra.mrb[0].mxu0 %v1521
    %v1589 = vpop.f32.mrb[0].mxu0
    %v1590 = vadd.f32 %v40, %v1589
    %v1591 = vpop.f32.mrb[0].mxu0
    %1592 = vdwg.mxu0
    %v1593 = vsel %vm217, %v1417, 0
    %1595 = vmatprep.subr.mxu0 0.0
    %1596 = vmatpush1.msra.mxu0 %v33
    %1597 = vmatprep.subr.mxu0 0.0
    %1598 = vmatpush1.msra.mxu0 %v34
    %1599 = vmatprep.subr.mxu0 0.0
    %1600 = vmatpush1.msra.mxu0 0.0
    %1601 = vmatprep.subr.mxu0 0.0
    %1602 = vmatpush1.msra.mxu0 0.0
    %1603 = vmatprep.subr.mxu0 0.0
    %1604 = vmatpush1.msra.mxu0 0.0
    %1605 = vmatprep.subr.mxu0 0.0
    %1606 = vmatpush1.msra.mxu0 0.0
    %1607 = vmatprep.subr.mxu0 0.0
    %1608 = vmatpush1.msra.mxu0 0.0
    %1609 = vmatprep.subr.mxu0 0.0
    %1610 = vmatpush1.msra.mxu0 0.0
    %1611 = vmatprep.subr.mxu0 0.0
    %1612 = vmatpush1.msra.mxu0 0.0
    %1613 = vmatprep.subr.mxu0 0.0
    %1614 = vmatpush1.msra.mxu0 0.0
    %1615 = vmatprep.subr.mxu0 0.0
    %1616 = vmatpush1.msra.mxu0 0.0
    %1617 = vmatprep.subr.mxu0 0.0
    %1618 = vmatpush1.msra.mxu0 0.0
    %1619 = vmatprep.subr.mxu0 0.0
    %1620 = vmatpush1.msra.mxu0 0.0
    %1621 = vmatprep.subr.mxu0 0.0
    %1622 = vmatpush1.msra.mxu0 0.0
    %1623 = vmatprep.subr.mxu0 0.0
    %1624 = vmatpush1.msra.mxu0 0.0
    %1625 = vmatprep.subr.mxu0 0.0
    %1626 = vmatpush1.msra.mxu0 0.0
    %1627 = vmatprep.subr.mxu0 0.0
    %1628 = vmatpush1.msra.mxu0 0.0
    %1629 = vmatprep.subr.mxu0 0.0
    %1630 = vmatpush1.msra.mxu0 0.0
    %1631 = vmatprep.subr.mxu0 0.0
    %1632 = vmatpush1.msra.mxu0 0.0
    %1633 = vmatprep.subr.mxu0 0.0
    %1634 = vmatpush1.msra.mxu0 0.0
    %1635 = vmatprep.subr.mxu0 0.0
    %1636 = vmatpush1.msra.mxu0 0.0
    %1637 = vmatprep.subr.mxu0 0.0
    %1638 = vmatpush1.msra.mxu0 0.0
    %1639 = vmatprep.subr.mxu0 0.0
    %1640 = vmatpush1.msra.mxu0 0.0
    %1641 = vmatprep.subr.mxu0 0.0
    %1642 = vmatpush1.msra.mxu0 0.0
    %1643 = vmatprep.subr.mxu0 0.0
    %1644 = vmatpush1.msra.mxu0 0.0
    %1645 = vmatprep.subr.mxu0 0.0
    %1646 = vmatpush1.msra.mxu0 0.0
    %1647 = vmatprep.subr.mxu0 0.0
    %1648 = vmatpush1.msra.mxu0 0.0
    %1649 = vmatprep.subr.mxu0 0.0
    %1650 = vmatpush1.msra.mxu0 0.0
    %1651 = vmatprep.subr.mxu0 0.0
    %1652 = vmatpush1.msra.mxu0 0.0
    %1653 = vmatprep.subr.mxu0 0.0
    %1654 = vmatpush1.msra.mxu0 0.0
    %1655 = vmatprep.subr.mxu0 0.0
    %1656 = vmatpush1.msra.mxu0 0.0
    %1657 = vmatprep.subr.mxu0 0.0
    %1658 = vmatpush1.msra.mxu0 0.0
    %1659 = vmatprep.mubr.f32.mxu0 0.0
    %1660 = vmatmul.mubr.f32.gmra.mrb[0].mxu0 %v1593
    %v1661 = vpop.f32.mrb[0].mxu0
    %v1662 = vadd.f32 0.0, %v1661
    %v1663 = vpop.f32.mrb[0].mxu0
    %1664 = vdwg.mxu0
    %v1665 = vadd.f32 %v1590, %v1662
    %v1666 = vxor.u32 %v1665, 2147483648
    %v1667 = vmul.f32 %v1666, 1.442695
    %v1668 = vpow.pop %v1667
    %v1669 = vadd.f32 %v1668, 1.0
    %v1670 = vrcp.pop %v1669
    %v1671 = vmul.f32 1.0, %v1670
    %v1672 = vtanh.pop %v1665
    %v1673 = vmul.f32 %v1671, %v1408
    %1675 = vrot.lane.b32.xlu0 %v1672, 96
    %v1676 = vpop.permute.xlu0 %1675
    %v1678 = vmul.f32 %v1671, %v1676
    %1680 = vrot.lane.b32.xlu0 %v1678, 16
    %v1681 = vpop.permute.xlu0 %1680
    %v1683 = vadd.f32 %v1673, %v1681
    %v1684 = vtanh.pop %v1683
    %1686 = vrot.lane.b32.xlu0 %v1684, 32
    %v1687 = vpop.permute.xlu0 %1686
    %v1689 = vmul.f32 %v1671, %v1687
    %1691 = vrot.lane.b32.xlu0 %v1689, 80
    %v1692 = vpop.permute.xlu0 %1691
    %s1694 = scalar_lea.vmem %s5, 10
    %1695 = vst.msk [vmem:[%s1694] sm:$0x3] %vm319, %v1692
    %s1696 = scalar_lea.vmem %s0, 12
    %v1697 = vld [vmem:[%s1696] sm:$0x3]
    %1698 = vmatprep.subr.mxu0 0.0
    %1699 = vmatpush1.msra.mxu0 %v25
    %1700 = vmatprep.subr.mxu0 0.0
    %1701 = vmatpush1.msra.mxu0 %v26
    %1702 = vmatprep.subr.mxu0 0.0
    %1703 = vmatpush1.msra.mxu0 %v27
    %1704 = vmatprep.subr.mxu0 0.0
    %1705 = vmatpush1.msra.mxu0 %v28
    %1706 = vmatprep.subr.mxu0 0.0
    %1707 = vmatpush1.msra.mxu0 0.0
    %1708 = vmatprep.subr.mxu0 0.0
    %1709 = vmatpush1.msra.mxu0 0.0
    %1710 = vmatprep.subr.mxu0 0.0
    %1711 = vmatpush1.msra.mxu0 0.0
    %1712 = vmatprep.subr.mxu0 0.0
    %1713 = vmatpush1.msra.mxu0 0.0
    %1714 = vmatprep.subr.mxu0 0.0
    %1715 = vmatpush1.msra.mxu0 0.0
    %1716 = vmatprep.subr.mxu0 0.0
    %1717 = vmatpush1.msra.mxu0 0.0
    %1718 = vmatprep.subr.mxu0 0.0
    %1719 = vmatpush1.msra.mxu0 0.0
    %1720 = vmatprep.subr.mxu0 0.0
    %1721 = vmatpush1.msra.mxu0 0.0
    %1722 = vmatprep.subr.mxu0 0.0
    %1723 = vmatpush1.msra.mxu0 0.0
    %1724 = vmatprep.subr.mxu0 0.0
    %1725 = vmatpush1.msra.mxu0 0.0
    %1726 = vmatprep.subr.mxu0 0.0
    %1727 = vmatpush1.msra.mxu0 0.0
    %1728 = vmatprep.subr.mxu0 0.0
    %1729 = vmatpush1.msra.mxu0 0.0
    %1730 = vmatprep.subr.mxu0 0.0
    %1731 = vmatpush1.msra.mxu0 0.0
    %1732 = vmatprep.subr.mxu0 0.0
    %1733 = vmatpush1.msra.mxu0 0.0
    %1734 = vmatprep.subr.mxu0 0.0
    %1735 = vmatpush1.msra.mxu0 0.0
    %1736 = vmatprep.subr.mxu0 0.0
    %1737 = vmatpush1.msra.mxu0 0.0
    %1738 = vmatprep.subr.mxu0 0.0
    %1739 = vmatpush1.msra.mxu0 0.0
    %1740 = vmatprep.subr.mxu0 0.0
    %1741 = vmatpush1.msra.mxu0 0.0
    %1742 = vmatprep.subr.mxu0 0.0
    %1743 = vmatpush1.msra.mxu0 0.0
    %1744 = vmatprep.subr.mxu0 0.0
    %1745 = vmatpush1.msra.mxu0 0.0
    %1746 = vmatprep.subr.mxu0 0.0
    %1747 = vmatpush1.msra.mxu0 0.0
    %1748 = vmatprep.subr.mxu0 0.0
    %1749 = vmatpush1.msra.mxu0 0.0
    %1750 = vmatprep.subr.mxu0 0.0
    %1751 = vmatpush1.msra.mxu0 0.0
    %1752 = vmatprep.subr.mxu0 0.0
    %1753 = vmatpush1.msra.mxu0 0.0
    %1754 = vmatprep.subr.mxu0 0.0
    %1755 = vmatpush1.msra.mxu0 0.0
    %1756 = vmatprep.subr.mxu0 0.0
    %1757 = vmatpush1.msra.mxu0 0.0
    %1758 = vmatprep.subr.mxu0 0.0
    %1759 = vmatpush1.msra.mxu0 0.0
    %1760 = vmatprep.subr.mxu0 0.0
    %1761 = vmatpush1.msra.mxu0 0.0
    %1762 = vmatprep.mubr.f32.mxu0 0.0
    %1763 = vmatmul.mubr.f32.gmra.mrb[0].mxu0 %v1521
    %v1764 = vpop.f32.mrb[0].mxu0
    %v1765 = vadd.f32 0.0, %v1764
    %v1766 = vpop.f32.mrb[0].mxu0
    %1767 = vdwg.mxu0
    %v1768 = vadd.f32 %v1697, %v1765
    %v1769 = vxor.u32 %v1768, 2147483648
    %v1770 = vmul.f32 %v1769, 1.442695
    %v1771 = vpow.pop %v1770
    %v1772 = vadd.f32 %v1771, 1.0
    %v1773 = vrcp.pop %v1772
    %v1774 = vmul.f32 1.0, %v1773
    %v1775 = vtanh.pop %v1768
    %v1776 = vmul.f32 %v1774, %v1511
    %1778 = vrot.lane.b32.xlu0 %v1775, 64
    %v1779 = vpop.permute.xlu0 %1778
    %v1781 = vmul.f32 %v1774, %v1779
    %1783 = vrot.lane.b32.xlu0 %v1781, 32
    %v1784 = vpop.permute.xlu0 %1783
    %v1786 = vadd.f32 %v1776, %v1784
    %v1787 = vtanh.pop %v1786
    %1789 = vrot.lane.b32.xlu0 %v1787, 64
    %v1790 = vpop.permute.xlu0 %1789
    %v1792 = vmul.f32 %v1774, %v1790
    %1794 = vrot.lane.b32.xlu0 %v1792, 32
    %v1795 = vpop.permute.xlu0 %1794
    %v1796 = vsel %vm43, %v1795, 0
    %1798 = vmatprep.subr.mxu0 0.0
    %1799 = vmatpush1.msra.mxu0 %v29
    %1800 = vmatprep.subr.mxu0 0.0
    %1801 = vmatpush1.msra.mxu0 %v30
    %1802 = vmatprep.subr.mxu0 0.0
    %1803 = vmatpush1.msra.mxu0 %v31
    %1804 = vmatprep.subr.mxu0 0.0
    %1805 = vmatpush1.msra.mxu0 %v32
    %1806 = vmatprep.subr.mxu0 0.0
    %1807 = vmatpush1.msra.mxu0 0.0
    %1808 = vmatprep.subr.mxu0 0.0
    %1809 = vmatpush1.msra.mxu0 0.0
    %1810 = vmatprep.subr.mxu0 0.0
    %1811 = vmatpush1.msra.mxu0 0.0
    %1812 = vmatprep.subr.mxu0 0.0
    %1813 = vmatpush1.msra.mxu0 0.0
    %1814 = vmatprep.subr.mxu0 0.0
    %1815 = vmatpush1.msra.mxu0 0.0
    %1816 = vmatprep.subr.mxu0 0.0
    %1817 = vmatpush1.msra.mxu0 0.0
    %1818 = vmatprep.subr.mxu0 0.0
    %1819 = vmatpush1.msra.mxu0 0.0
    %1820 = vmatprep.subr.mxu0 0.0
    %1821 = vmatpush1.msra.mxu0 0.0
    %1822 = vmatprep.subr.mxu0 0.0
    %1823 = vmatpush1.msra.mxu0 0.0
    %1824 = vmatprep.subr.mxu0 0.0
    %1825 = vmatpush1.msra.mxu0 0.0
    %1826 = vmatprep.subr.mxu0 0.0
    %1827 = vmatpush1.msra.mxu0 0.0
    %1828 = vmatprep.subr.mxu0 0.0
    %1829 = vmatpush1.msra.mxu0 0.0
    %1830 = vmatprep.subr.mxu0 0.0
    %1831 = vmatpush1.msra.mxu0 0.0
    %1832 = vmatprep.subr.mxu0 0.0
    %1833 = vmatpush1.msra.mxu0 0.0
    %1834 = vmatprep.subr.mxu0 0.0
    %1835 = vmatpush1.msra.mxu0 0.0
    %1836 = vmatprep.subr.mxu0 0.0
    %1837 = vmatpush1.msra.mxu0 0.0
    %1838 = vmatprep.subr.mxu0 0.0
    %1839 = vmatpush1.msra.mxu0 0.0
    %1840 = vmatprep.subr.mxu0 0.0
    %1841 = vmatpush1.msra.mxu0 0.0
    %1842 = vmatprep.subr.mxu0 0.0
    %1843 = vmatpush1.msra.mxu0 0.0
    %1844 = vmatprep.subr.mxu0 0.0
    %1845 = vmatpush1.msra.mxu0 0.0
    %1846 = vmatprep.subr.mxu0 0.0
    %1847 = vmatpush1.msra.mxu0 0.0
    %1848 = vmatprep.subr.mxu0 0.0
    %1849 = vmatpush1.msra.mxu0 0.0
    %1850 = vmatprep.subr.mxu0 0.0
    %1851 = vmatpush1.msra.mxu0 0.0
    %1852 = vmatprep.subr.mxu0 0.0
    %1853 = vmatpush1.msra.mxu0 0.0
    %1854 = vmatprep.subr.mxu0 0.0
    %1855 = vmatpush1.msra.mxu0 0.0
    %1856 = vmatprep.subr.mxu0 0.0
    %1857 = vmatpush1.msra.mxu0 0.0
    %1858 = vmatprep.subr.mxu0 0.0
    %1859 = vmatpush1.msra.mxu0 0.0
    %1860 = vmatprep.subr.mxu0 0.0
    %1861 = vmatpush1.msra.mxu0 0.0
    %1862 = vmatprep.mubr.f32.mxu0 0.0
    %1863 = vmatmul.mubr.f32.gmra.mrb[0].mxu0 %v1796
    %v1864 = vpop.f32.mrb[0].mxu0
    %v1865 = vadd.f32 %v40, %v1864
    %v1866 = vpop.f32.mrb[0].mxu0
    %1867 = vdwg.mxu0
    %v1868 = vsel %vm217, %v1692, 0
    %1870 = vmatprep.subr.mxu0 0.0
    %1871 = vmatpush1.msra.mxu0 %v33
    %1872 = vmatprep.subr.mxu0 0.0
    %1873 = vmatpush1.msra.mxu0 %v34
    %1874 = vmatprep.subr.mxu0 0.0
    %1875 = vmatpush1.msra.mxu0 0.0
    %1876 = vmatprep.subr.mxu0 0.0
    %1877 = vmatpush1.msra.mxu0 0.0
    %1878 = vmatprep.subr.mxu0 0.0
    %1879 = vmatpush1.msra.mxu0 0.0
    %1880 = vmatprep.subr.mxu0 0.0
    %1881 = vmatpush1.msra.mxu0 0.0
    %1882 = vmatprep.subr.mxu0 0.0
    %1883 = vmatpush1.msra.mxu0 0.0
    %1884 = vmatprep.subr.mxu0 0.0
    %1885 = vmatpush1.msra.mxu0 0.0
    %1886 = vmatprep.subr.mxu0 0.0
    %1887 = vmatpush1.msra.mxu0 0.0
    %1888 = vmatprep.subr.mxu0 0.0
    %1889 = vmatpush1.msra.mxu0 0.0
    %1890 = vmatprep.subr.mxu0 0.0
    %1891 = vmatpush1.msra.mxu0 0.0
    %1892 = vmatprep.subr.mxu0 0.0
    %1893 = vmatpush1.msra.mxu0 0.0
    %1894 = vmatprep.subr.mxu0 0.0
    %1895 = vmatpush1.msra.mxu0 0.0
    %1896 = vmatprep.subr.mxu0 0.0
    %1897 = vmatpush1.msra.mxu0 0.0
    %1898 = vmatprep.subr.mxu0 0.0
    %1899 = vmatpush1.msra.mxu0 0.0
    %1900 = vmatprep.subr.mxu0 0.0
    %1901 = vmatpush1.msra.mxu0 0.0
    %1902 = vmatprep.subr.mxu0 0.0
    %1903 = vmatpush1.msra.mxu0 0.0
    %1904 = vmatprep.subr.mxu0 0.0
    %1905 = vmatpush1.msra.mxu0 0.0
    %1906 = vmatprep.subr.mxu0 0.0
    %1907 = vmatpush1.msra.mxu0 0.0
    %1908 = vmatprep.subr.mxu0 0.0
    %1909 = vmatpush1.msra.mxu0 0.0
    %1910 = vmatprep.subr.mxu0 0.0
    %1911 = vmatpush1.msra.mxu0 0.0
    %1912 = vmatprep.subr.mxu0 0.0
    %1913 = vmatpush1.msra.mxu0 0.0
    %1914 = vmatprep.subr.mxu0 0.0
    %1915 = vmatpush1.msra.mxu0 0.0
    %1916 = vmatprep.subr.mxu0 0.0
    %1917 = vmatpush1.msra.mxu0 0.0
    %1918 = vmatprep.subr.mxu0 0.0
    %1919 = vmatpush1.msra.mxu0 0.0
    %1920 = vmatprep.subr.mxu0 0.0
    %1921 = vmatpush1.msra.mxu0 0.0
    %1922 = vmatprep.subr.mxu0 0.0
    %1923 = vmatpush1.msra.mxu0 0.0
    %1924 = vmatprep.subr.mxu0 0.0
    %1925 = vmatpush1.msra.mxu0 0.0
    %1926 = vmatprep.subr.mxu0 0.0
    %1927 = vmatpush1.msra.mxu0 0.0
    %1928 = vmatprep.subr.mxu0 0.0
    %1929 = vmatpush1.msra.mxu0 0.0
    %1930 = vmatprep.subr.mxu0 0.0
    %1931 = vmatpush1.msra.mxu0 0.0
    %1932 = vmatprep.subr.mxu0 0.0
    %1933 = vmatpush1.msra.mxu0 0.0
    %1934 = vmatprep.mubr.f32.mxu0 0.0
    %1935 = vmatmul.mubr.f32.gmra.mrb[0].mxu0 %v1868
    %v1936 = vpop.f32.mrb[0].mxu0
    %v1937 = vadd.f32 0.0, %v1936
    %v1938 = vpop.f32.mrb[0].mxu0
    %1939 = vdwg.mxu0
    %v1940 = vadd.f32 %v1865, %v1937
    %v1941 = vxor.u32 %v1940, 2147483648
    %v1942 = vmul.f32 %v1941, 1.442695
    %v1943 = vpow.pop %v1942
    %v1944 = vadd.f32 %v1943, 1.0
    %v1945 = vrcp.pop %v1944
    %v1946 = vmul.f32 1.0, %v1945
    %v1947 = vtanh.pop %v1940
    %v1948 = vmul.f32 %v1946, %v1683
    %1950 = vrot.lane.b32.xlu0 %v1947, 96
    %v1951 = vpop.permute.xlu0 %1950
    %v1953 = vmul.f32 %v1946, %v1951
    %1955 = vrot.lane.b32.xlu0 %v1953, 16
    %v1956 = vpop.permute.xlu0 %1955
    %v1958 = vadd.f32 %v1948, %v1956
    %v1959 = vtanh.pop %v1958
    %1961 = vrot.lane.b32.xlu0 %v1959, 32
    %v1962 = vpop.permute.xlu0 %1961
    %v1964 = vmul.f32 %v1946, %v1962
    %1966 = vrot.lane.b32.xlu0 %v1964, 80
    %v1967 = vpop.permute.xlu0 %1966
    %s1969 = scalar_lea.vmem %s5, 12
    %1970 = vst.msk [vmem:[%s1969] sm:$0x3] %vm319, %v1967
    %s1971 = scalar_lea.vmem %s0, 14
    %v1972 = vld [vmem:[%s1971] sm:$0x3]
    %1973 = vmatprep.subr.mxu0 0.0
    %1974 = vmatpush1.msra.mxu0 %v25
    %1975 = vmatprep.subr.mxu0 0.0
    %1976 = vmatpush1.msra.mxu0 %v26
    %1977 = vmatprep.subr.mxu0 0.0
    %1978 = vmatpush1.msra.mxu0 %v27
    %1979 = vmatprep.subr.mxu0 0.0
    %1980 = vmatpush1.msra.mxu0 %v28
    %1981 = vmatprep.subr.mxu0 0.0
    %1982 = vmatpush1.msra.mxu0 0.0
    %1983 = vmatprep.subr.mxu0 0.0
    %1984 = vmatpush1.msra.mxu0 0.0
    %1985 = vmatprep.subr.mxu0 0.0
    %1986 = vmatpush1.msra.mxu0 0.0
    %1987 = vmatprep.subr.mxu0 0.0
    %1988 = vmatpush1.msra.mxu0 0.0
    %1989 = vmatprep.subr.mxu0 0.0
    %1990 = vmatpush1.msra.mxu0 0.0
    %1991 = vmatprep.subr.mxu0 0.0
    %1992 = vmatpush1.msra.mxu0 0.0
    %1993 = vmatprep.subr.mxu0 0.0
    %1994 = vmatpush1.msra.mxu0 0.0
    %1995 = vmatprep.subr.mxu0 0.0
    %1996 = vmatpush1.msra.mxu0 0.0
    %1997 = vmatprep.subr.mxu0 0.0
    %1998 = vmatpush1.msra.mxu0 0.0
    %1999 = vmatprep.subr.mxu0 0.0
    %2000 = vmatpush1.msra.mxu0 0.0
    %2001 = vmatprep.subr.mxu0 0.0
    %2002 = vmatpush1.msra.mxu0 0.0
    %2003 = vmatprep.subr.mxu0 0.0
    %2004 = vmatpush1.msra.mxu0 0.0
    %2005 = vmatprep.subr.mxu0 0.0
    %2006 = vmatpush1.msra.mxu0 0.0
    %2007 = vmatprep.subr.mxu0 0.0
    %2008 = vmatpush1.msra.mxu0 0.0
    %2009 = vmatprep.subr.mxu0 0.0
    %2010 = vmatpush1.msra.mxu0 0.0
    %2011 = vmatprep.subr.mxu0 0.0
    %2012 = vmatpush1.msra.mxu0 0.0
    %2013 = vmatprep.subr.mxu0 0.0
    %2014 = vmatpush1.msra.mxu0 0.0
    %2015 = vmatprep.subr.mxu0 0.0
    %2016 = vmatpush1.msra.mxu0 0.0
    %2017 = vmatprep.subr.mxu0 0.0
    %2018 = vmatpush1.msra.mxu0 0.0
    %2019 = vmatprep.subr.mxu0 0.0
    %2020 = vmatpush1.msra.mxu0 0.0
    %2021 = vmatprep.subr.mxu0 0.0
    %2022 = vmatpush1.msra.mxu0 0.0
    %2023 = vmatprep.subr.mxu0 0.0
    %2024 = vmatpush1.msra.mxu0 0.0
    %2025 = vmatprep.subr.mxu0 0.0
    %2026 = vmatpush1.msra.mxu0 0.0
    %2027 = vmatprep.subr.mxu0 0.0
    %2028 = vmatpush1.msra.mxu0 0.0
    %2029 = vmatprep.subr.mxu0 0.0
    %2030 = vmatpush1.msra.mxu0 0.0
    %2031 = vmatprep.subr.mxu0 0.0
    %2032 = vmatpush1.msra.mxu0 0.0
    %2033 = vmatprep.subr.mxu0 0.0
    %2034 = vmatpush1.msra.mxu0 0.0
    %2035 = vmatprep.subr.mxu0 0.0
    %2036 = vmatpush1.msra.mxu0 0.0
    %2037 = vmatprep.mubr.f32.mxu0 0.0
    %2038 = vmatmul.mubr.f32.gmra.mrb[0].mxu0 %v1796
    %v2039 = vpop.f32.mrb[0].mxu0
    %v2040 = vadd.f32 0.0, %v2039
    %v2041 = vpop.f32.mrb[0].mxu0
    %2042 = vdwg.mxu0
    %v2043 = vadd.f32 %v1972, %v2040
    %v2044 = vxor.u32 %v2043, 2147483648
    %v2045 = vmul.f32 %v2044, 1.442695
    %v2046 = vpow.pop %v2045
    %v2047 = vadd.f32 %v2046, 1.0
    %v2048 = vrcp.pop %v2047
    %v2049 = vmul.f32 1.0, %v2048
    %v2050 = vtanh.pop %v2043
    %v2051 = vmul.f32 %v2049, %v1786
    %2053 = vrot.lane.b32.xlu0 %v2050, 64
    %v2054 = vpop.permute.xlu0 %2053
    %v2056 = vmul.f32 %v2049, %v2054
    %2058 = vrot.lane.b32.xlu0 %v2056, 32
    %v2059 = vpop.permute.xlu0 %2058
    %v2061 = vadd.f32 %v2051, %v2059
    %v2062 = vtanh.pop %v2061
    %2064 = vrot.lane.b32.xlu0 %v2062, 64
    %v2065 = vpop.permute.xlu0 %2064
    %v2067 = vmul.f32 %v2049, %v2065
    %2069 = vrot.lane.b32.xlu0 %v2067, 32
    %v2070 = vpop.permute.xlu0 %2069
    %v2071 = vsel %vm43, %v2070, 0
    %2073 = vmatprep.subr.mxu0 0.0
    %2074 = vmatpush1.msra.mxu0 %v29
    %2075 = vmatprep.subr.mxu0 0.0
    %2076 = vmatpush1.msra.mxu0 %v30
    %2077 = vmatprep.subr.mxu0 0.0
    %2078 = vmatpush1.msra.mxu0 %v31
    %2079 = vmatprep.subr.mxu0 0.0
    %2080 = vmatpush1.msra.mxu0 %v32
    %2081 = vmatprep.subr.mxu0 0.0
    %2082 = vmatpush1.msra.mxu0 0.0
    %2083 = vmatprep.subr.mxu0 0.0
    %2084 = vmatpush1.msra.mxu0 0.0
    %2085 = vmatprep.subr.mxu0 0.0
    %2086 = vmatpush1.msra.mxu0 0.0
    %2087 = vmatprep.subr.mxu0 0.0
    %2088 = vmatpush1.msra.mxu0 0.0
    %2089 = vmatprep.subr.mxu0 0.0
    %2090 = vmatpush1.msra.mxu0 0.0
    %2091 = vmatprep.subr.mxu0 0.0
    %2092 = vmatpush1.msra.mxu0 0.0
    %2093 = vmatprep.subr.mxu0 0.0
    %2094 = vmatpush1.msra.mxu0 0.0
    %2095 = vmatprep.subr.mxu0 0.0
    %2096 = vmatpush1.msra.mxu0 0.0
    %2097 = vmatprep.subr.mxu0 0.0
    %2098 = vmatpush1.msra.mxu0 0.0
    %2099 = vmatprep.subr.mxu0 0.0
    %2100 = vmatpush1.msra.mxu0 0.0
    %2101 = vmatprep.subr.mxu0 0.0
    %2102 = vmatpush1.msra.mxu0 0.0
    %2103 = vmatprep.subr.mxu0 0.0
    %2104 = vmatpush1.msra.mxu0 0.0
    %2105 = vmatprep.subr.mxu0 0.0
    %2106 = vmatpush1.msra.mxu0 0.0
    %2107 = vmatprep.subr.mxu0 0.0
    %2108 = vmatpush1.msra.mxu0 0.0
    %2109 = vmatprep.subr.mxu0 0.0
    %2110 = vmatpush1.msra.mxu0 0.0
    %2111 = vmatprep.subr.mxu0 0.0
    %2112 = vmatpush1.msra.mxu0 0.0
    %2113 = vmatprep.subr.mxu0 0.0
    %2114 = vmatpush1.msra.mxu0 0.0
    %2115 = vmatprep.subr.mxu0 0.0
    %2116 = vmatpush1.msra.mxu0 0.0
    %2117 = vmatprep.subr.mxu0 0.0
    %2118 = vmatpush1.msra.mxu0 0.0
    %2119 = vmatprep.subr.mxu0 0.0
    %2120 = vmatpush1.msra.mxu0 0.0
    %2121 = vmatprep.subr.mxu0 0.0
    %2122 = vmatpush1.msra.mxu0 0.0
    %2123 = vmatprep.subr.mxu0 0.0
    %2124 = vmatpush1.msra.mxu0 0.0
    %2125 = vmatprep.subr.mxu0 0.0
    %2126 = vmatpush1.msra.mxu0 0.0
    %2127 = vmatprep.subr.mxu0 0.0
    %2128 = vmatpush1.msra.mxu0 0.0
    %2129 = vmatprep.subr.mxu0 0.0
    %2130 = vmatpush1.msra.mxu0 0.0
    %2131 = vmatprep.subr.mxu0 0.0
    %2132 = vmatpush1.msra.mxu0 0.0
    %2133 = vmatprep.subr.mxu0 0.0
    %2134 = vmatpush1.msra.mxu0 0.0
    %2135 = vmatprep.subr.mxu0 0.0
    %2136 = vmatpush1.msra.mxu0 0.0
    %2137 = vmatprep.mubr.f32.mxu0 0.0
    %2138 = vmatmul.mubr.f32.gmra.mrb[0].mxu0 %v2071
    %v2139 = vpop.f32.mrb[0].mxu0
    %v2140 = vadd.f32 %v40, %v2139
    %v2141 = vpop.f32.mrb[0].mxu0
    %2142 = vdwg.mxu0
    %v2143 = vsel %vm217, %v1967, 0
    %2145 = vmatprep.subr.mxu0 0.0
    %2146 = vmatpush1.msra.mxu0 %v33
    %2147 = vmatprep.subr.mxu0 0.0
    %2148 = vmatpush1.msra.mxu0 %v34
    %2149 = vmatprep.subr.mxu0 0.0
    %2150 = vmatpush1.msra.mxu0 0.0
    %2151 = vmatprep.subr.mxu0 0.0
    %2152 = vmatpush1.msra.mxu0 0.0
    %2153 = vmatprep.subr.mxu0 0.0
    %2154 = vmatpush1.msra.mxu0 0.0
    %2155 = vmatprep.subr.mxu0 0.0
    %2156 = vmatpush1.msra.mxu0 0.0
    %2157 = vmatprep.subr.mxu0 0.0
    %2158 = vmatpush1.msra.mxu0 0.0
    %2159 = vmatprep.subr.mxu0 0.0
    %2160 = vmatpush1.msra.mxu0 0.0
    %2161 = vmatprep.subr.mxu0 0.0
    %2162 = vmatpush1.msra.mxu0 0.0
    %2163 = vmatprep.subr.mxu0 0.0
    %2164 = vmatpush1.msra.mxu0 0.0
    %2165 = vmatprep.subr.mxu0 0.0
    %2166 = vmatpush1.msra.mxu0 0.0
    %2167 = vmatprep.subr.mxu0 0.0
    %2168 = vmatpush1.msra.mxu0 0.0
    %2169 = vmatprep.subr.mxu0 0.0
    %2170 = vmatpush1.msra.mxu0 0.0
    %2171 = vmatprep.subr.mxu0 0.0
    %2172 = vmatpush1.msra.mxu0 0.0
    %2173 = vmatprep.subr.mxu0 0.0
    %2174 = vmatpush1.msra.mxu0 0.0
    %2175 = vmatprep.subr.mxu0 0.0
    %2176 = vmatpush1.msra.mxu0 0.0
    %2177 = vmatprep.subr.mxu0 0.0
    %2178 = vmatpush1.msra.mxu0 0.0
    %2179 = vmatprep.subr.mxu0 0.0
    %2180 = vmatpush1.msra.mxu0 0.0
    %2181 = vmatprep.subr.mxu0 0.0
    %2182 = vmatpush1.msra.mxu0 0.0
    %2183 = vmatprep.subr.mxu0 0.0
    %2184 = vmatpush1.msra.mxu0 0.0
    %2185 = vmatprep.subr.mxu0 0.0
    %2186 = vmatpush1.msra.mxu0 0.0
    %2187 = vmatprep.subr.mxu0 0.0
    %2188 = vmatpush1.msra.mxu0 0.0
    %2189 = vmatprep.subr.mxu0 0.0
    %2190 = vmatpush1.msra.mxu0 0.0
    %2191 = vmatprep.subr.mxu0 0.0
    %2192 = vmatpush1.msra.mxu0 0.0
    %2193 = vmatprep.subr.mxu0 0.0
    %2194 = vmatpush1.msra.mxu0 0.0
    %2195 = vmatprep.subr.mxu0 0.0
    %2196 = vmatpush1.msra.mxu0 0.0
    %2197 = vmatprep.subr.mxu0 0.0
    %2198 = vmatpush1.msra.mxu0 0.0
    %2199 = vmatprep.subr.mxu0 0.0
    %2200 = vmatpush1.msra.mxu0 0.0
    %2201 = vmatprep.subr.mxu0 0.0
    %2202 = vmatpush1.msra.mxu0 0.0
    %2203 = vmatprep.subr.mxu0 0.0
    %2204 = vmatpush1.msra.mxu0 0.0
    %2205 = vmatprep.subr.mxu0 0.0
    %2206 = vmatpush1.msra.mxu0 0.0
    %2207 = vmatprep.subr.mxu0 0.0
    %2208 = vmatpush1.msra.mxu0 0.0
    %2209 = vmatprep.mubr.f32.mxu0 0.0
    %2210 = vmatmul.mubr.f32.gmra.mrb[0].mxu0 %v2143
    %v2211 = vpop.f32.mrb[0].mxu0
    %v2212 = vadd.f32 0.0, %v2211
    %v2213 = vpop.f32.mrb[0].mxu0
    %2214 = vdwg.mxu0
    %v2215 = vadd.f32 %v2140, %v2212
    %v2216 = vxor.u32 %v2215, 2147483648
    %v2217 = vmul.f32 %v2216, 1.442695
    %v2218 = vpow.pop %v2217
    %v2219 = vadd.f32 %v2218, 1.0
    %v2220 = vrcp.pop %v2219
    %v2221 = vmul.f32 1.0, %v2220
    %v2222 = vtanh.pop %v2215
    %v2223 = vmul.f32 %v2221, %v1958
    %2225 = vrot.lane.b32.xlu0 %v2222, 96
    %v2226 = vpop.permute.xlu0 %2225
    %v2228 = vmul.f32 %v2221, %v2226
    %2230 = vrot.lane.b32.xlu0 %v2228, 16
    %v2231 = vpop.permute.xlu0 %2230
    %v2233 = vadd.f32 %v2223, %v2231
    %v2234 = vtanh.pop %v2233
    %2236 = vrot.lane.b32.xlu0 %v2234, 32
    %v2237 = vpop.permute.xlu0 %2236
    %v2239 = vmul.f32 %v2221, %v2237
    %2241 = vrot.lane.b32.xlu0 %v2239, 80
    %v2242 = vpop.permute.xlu0 %2241
    %s2244 = scalar_lea.vmem %s5, 14
    %2245 = vst.msk [vmem:[%s2244] sm:$0x3] %vm319, %v2242
    %2246 = vst.msk [vmem:[#allocation2] sm:$0x3] %vm319, %v2242
    %2248 = vrot.lane.b32.xlu0 %v2233, 112
    %v2249 = vpop.permute.xlu0 %2248
    %2251 = vst.msk [vmem:[#allocation4] sm:$0x3] %vm319, %v2249
    // Predicated region
    $region22: #{encoder_forward.1} parent=1 // pred_check
      _
    $region23: #{encoder_forward.1} parent=1 // pred_check_branch
      %2253 = sbr.rel (0) target = $region25
    $region24: #{encoder_forward.1} parent=1 // pred_region
      _
    $region25: #{encoder_forward.1} parent=1 // pred_fallthru
      _
    // Predicated region
    $region26: #{encoder_forward.1} parent=1 // pred_check
      _
    $region27: #{encoder_forward.1} parent=1 // pred_check_branch
      %2255 = sbr.rel (0) target = $region29
    $region28: #{encoder_forward.1} parent=1 // pred_region
      %s2257 = ssub.s32 32, 32
      %2258 = vsyncadd [#allocation3], %s2257
      %s2260 = sshll.u32 [#allocation2], 4
      %s2261 = int_to_ptr.vmem [resolvable:$true] %s2260
      %2263 = dma.vmem_to_hbm [thread:$0]  %s2261, 32, %s6, [#allocation3]
    $region29: #{encoder_forward.1} parent=1 // pred_fallthru
      _
    // Predicated region
    $region30: #{encoder_forward.1} parent=1 // pred_check
      _
    $region31: #{encoder_forward.1} parent=1 // pred_check_branch
      %2265 = sbr.rel (0) target = $region33
    $region32: #{encoder_forward.1} parent=1 // pred_region
      %s2267 = ssub.s32 32, 32
      %2268 = vsyncadd [#allocation5], %s2267
      %s2270 = sshll.u32 [#allocation4], 4
      %s2271 = int_to_ptr.vmem [resolvable:$true] %s2270
      %2273 = dma.vmem_to_hbm [thread:$0]  %s2271, 32, %s7, [#allocation5]
    $region33: #{encoder_forward.1} parent=1 // pred_fallthru
      _
    // Predicated region
    $region34: #{encoder_forward.1} parent=1 // pred_check
      _
    $region35: #{encoder_forward.1} parent=1 // pred_check_branch
      %2275 = sbr.rel (0) target = $region37
    $region36: #{encoder_forward.1} parent=1 // pred_region
      _
    $region37: #{encoder_forward.1} parent=1 // pred_fallthru
      _
    // Predicated region
    $region38: #{encoder_forward.1} parent=1 // pred_check
      _
    $region39: #{encoder_forward.1} parent=1 // pred_check_branch
      %2277 = sbr.rel (0) target = $region41
    $region40: #{encoder_forward.1} parent=1 // pred_region
      %2278 = dma.done [#allocation3], 32
    $region41: #{encoder_forward.1} parent=1 // pred_fallthru
      _
    // Predicated region
    $region42: #{encoder_forward.1} parent=1 // pred_check
      _
    $region43: #{encoder_forward.1} parent=1 // pred_check_branch
      %2280 = sbr.rel (0) target = $region45
    $region44: #{encoder_forward.1} parent=1 // pred_region
      %2281 = dma.done [#allocation5], 32
    $region45: #{encoder_forward.1} parent=1 // pred_fallthru
      _
    %2282 = vsyncpa [#allocation3], 1
    %2283 = vsyncpa [#allocation5], 1

</llo_original>
